<compile_context>
chip_gen: v5e
topology: v5e:2x2
jax: 0.10.0
libtpu: 0.0.40
codegen_flags: <defaults>
</compile_context>

<pallas_src>
import functools

import jax
import jax.numpy as jnp
from jax.experimental import pallas as pl
from jax.experimental.pallas import tpu as pltpu

# ----------------------- small BERT-like config -----------------------------
VOCAB = 128
MAX_POS = 16
HIDDEN = 32
N_HEADS = 2
HEAD_DIM = HIDDEN // N_HEADS
N_LAYERS = 2
INTERMEDIATE = 64
NUM_CLASSES = 3
OUT_PAD = 128           # lane-dense classifier output width (store [B,128])
LN_EPS = 1e-12


# ----------------------------- pallas helpers --------------------------------
def _full_spec(shape):
    nd = len(shape)
    return pl.BlockSpec(shape, lambda i, _nd=nd: (0,) * _nd)


# ------------------------------ fused kernel ----------------------------------
def _fused_forward_kernel(
    emb_ref, mask_ref, eg_ref, eb_ref,
    w_qkv_ref, b_qkv_ref, w_o_ref, b_o_ref,
    w_i_ref, b_i_ref, w_f_ref, b_f_ref,
    ln1g_ref, ln1b_ref, ln2g_ref, ln2b_ref,
    pw_ref, pb_ref, ow_ref, ob_ref,
    o_ref, *, batch, seq,
):
    def ln(x, g, b):  # f32 LayerNorm
        mu = jnp.mean(x, axis=-1, keepdims=True)
        xc = x - mu
        var = jnp.mean(xc * xc, axis=-1, keepdims=True)
        return xc * jax.lax.rsqrt(var + LN_EPS) * g + b

    def mm(x, w):  # bf16 MXU operands, f32 accumulation
        return jnp.dot(x.astype(jnp.bfloat16), w.astype(jnp.bfloat16),
                       preferred_element_type=jnp.float32)

    def mm_nt(a, b):  # a @ b.T without an explicit transpose
        return jax.lax.dot_general(
            a.astype(jnp.bfloat16), b.astype(jnp.bfloat16),
            dimension_numbers=(((1,), (1,)), ((), ())),
            preferred_element_type=jnp.float32)

    # --- embedding LayerNorm ---
    h = ln(emb_ref[...], eg_ref[...], eb_ref[...])        # [B*S, H] f32
    mask2d = mask_ref[...]                                # [B*S, B*S] block-diag additive

    # --- encoder layers (unrolled; all weights VMEM-resident) ---
    for l in range(N_LAYERS):
        # fused QKV projection over ALL B*S rows; Q already carries 1/sqrt(D)
        qkv = mm(h, w_qkv_ref[l]) + b_qkv_ref[l]          # [B*S, 3H]

        ctx_heads = []
        for hh in range(N_HEADS):
            q = qkv[:, hh * HEAD_DIM:(hh + 1) * HEAD_DIM]                         # [B*S, D]
            k = qkv[:, HIDDEN + hh * HEAD_DIM:HIDDEN + (hh + 1) * HEAD_DIM]
            v = qkv[:, 2 * HIDDEN + hh * HEAD_DIM:2 * HIDDEN + (hh + 1) * HEAD_DIM]
            s = mm_nt(q, k) + mask2d                      # [B*S, B*S] f32
            s = s - jnp.max(s, axis=-1, keepdims=True)
            p = jnp.exp(s)
            p = p * pl.reciprocal(jnp.sum(p, axis=-1, keepdims=True), approx=True)
            ctx_heads.append(mm(p, v))                    # [B*S, D]
        ctx = jnp.concatenate(ctx_heads, axis=-1)         # [B*S, H] (lane-axis concat)

        attn = mm(ctx, w_o_ref[l]) + b_o_ref[l]           # single [H,H] output proj
        h = ln(attn + h, ln1g_ref[l], ln1b_ref[l])

        inter = mm(h, w_i_ref[l]) + b_i_ref[l]            # [B*S, I]
        # tanh-approximate GELU, f32 element-wise path
        inter = 0.5 * inter * (1.0 + jnp.tanh(
            0.7978845608028654 * (inter + 0.044715 * inter * inter * inter)))
        ffn = mm(inter, w_f_ref[l]) + b_f_ref[l]          # [B*S, H]
        h = ln(ffn + h, ln2g_ref[l], ln2b_ref[l])

    # --- batched pooler on all [CLS] rows, dropout (identity at eval),
    #     Linear head, softmax; single lane-dense [B, 128] store ---
    cls = jnp.concatenate([h[b * seq:b * seq + 1, :] for b in range(batch)],
                          axis=0)                         # [B, H]
    pooled = jnp.tanh(mm(cls, pw_ref[...]) + pb_ref[...])  # [B, H]
    logits = mm(pooled, ow_ref[...]) + ob_ref[...]        # [B, 128]; pads get -1e9 bias
    logits = logits - jnp.max(logits, axis=-1, keepdims=True)
    e = jnp.exp(logits)                                   # padded lanes underflow to 0
    o_ref[...] = (e / jnp.sum(e, axis=-1, keepdims=True)).astype(o_ref.dtype)


# --------------------------- parameter creation --------------------------------
def init_params(key):
    def nrm(k, shape):
        return 0.02 * jax.random.normal(k, shape, jnp.float32)

    ks = iter(jax.random.split(key, 9))
    bf16 = jnp.bfloat16
    attn_scale = 1.0 / float(HEAD_DIM) ** 0.5

    # fold 1/sqrt(HEAD_DIM) into the Q block of the fused QKV projection
    w_qkv = nrm(next(ks), (N_LAYERS, HIDDEN, 3 * HIDDEN))
    w_qkv = w_qkv.at[:, :, :HIDDEN].multiply(attn_scale)
    b_qkv = jnp.zeros((N_LAYERS, 1, 3 * HIDDEN), jnp.float32)
    b_qkv = b_qkv.at[:, :, :HIDDEN].multiply(attn_scale)

    # lane-pad classifier head to 128 output lanes; padded logits get -1e9 bias
    out_w = jnp.zeros((HIDDEN, OUT_PAD), jnp.float32).at[:, :NUM_CLASSES].set(
        nrm(next(ks), (HIDDEN, NUM_CLASSES)))
    out_b = jnp.full((1, OUT_PAD), -1e9, jnp.float32).at[:, :NUM_CLASSES].set(0.0)

    return {
        # embedding tables (used by host-side gather, kept f32)
        "word_emb": nrm(next(ks), (VOCAB, HIDDEN)),
        "pos_emb": nrm(next(ks), (MAX_POS, HIDDEN)),
        "type_emb": nrm(next(ks), (2, HIDDEN)),
        "emb_ln_g": jnp.ones((1, HIDDEN), jnp.float32),
        "emb_ln_b": jnp.zeros((1, HIDDEN), jnp.float32),
        # per-layer stacked weights (bf16 MXU operands) and f32 biases / LN params
        "w_qkv": w_qkv.astype(bf16),
        "b_qkv": b_qkv,
        "w_o": nrm(next(ks), (N_LAYERS, HIDDEN, HIDDEN)).astype(bf16),
        "b_o": jnp.zeros((N_LAYERS, 1, HIDDEN), jnp.float32),
        "w_i": nrm(next(ks), (N_LAYERS, HIDDEN, INTERMEDIATE)).astype(bf16),
        "b_i": jnp.zeros((N_LAYERS, 1, INTERMEDIATE), jnp.float32),
        "w_f": nrm(next(ks), (N_LAYERS, INTERMEDIATE, HIDDEN)).astype(bf16),
        "b_f": jnp.zeros((N_LAYERS, 1, HIDDEN), jnp.float32),
        "ln1_g": jnp.ones((N_LAYERS, 1, HIDDEN), jnp.float32),
        "ln1_b": jnp.zeros((N_LAYERS, 1, HIDDEN), jnp.float32),
        "ln2_g": jnp.ones((N_LAYERS, 1, HIDDEN), jnp.float32),
        "ln2_b": jnp.zeros((N_LAYERS, 1, HIDDEN), jnp.float32),
        # pooler + (lane-padded) classifier head
        "pool_w": nrm(next(ks), (HIDDEN, HIDDEN)).astype(bf16),
        "pool_b": jnp.zeros((1, HIDDEN), jnp.float32),
        "out_w": out_w.astype(bf16),
        "out_b": out_b,
    }


# ------------------------------ forward pass -----------------------------------
@jax.jit
def senti_reader_forward(params, input_ids, attention_mask):
    B, S = input_ids.shape
    assert S <= MAX_POS, "sequence length exceeds surrogate position table"

    # embedding gathers are glue (XLA); everything after runs in one Pallas call
    emb = (
        params["word_emb"][input_ids]
        + params["pos_emb"][:S][None, :, :]
        + params["type_emb"][0][None, None, :]
    ).reshape(B * S, HIDDEN).astype(jnp.float32)

    # block-diagonal additive mask over the flattened [B*S] rows:
    #   0 for (same batch AND key valid), -10000 otherwise.  This lets the
    # kernel compute attention for all batches in ONE [B*S, B*S] score matmul.
    batch_of = jnp.repeat(jnp.arange(B), S)                         # [B*S]
    same_b = batch_of[:, None] == batch_of[None, :]                 # [B*S, B*S]
    key_valid = attention_mask.reshape(-1).astype(bool)             # [B*S]
    valid = jnp.logical_and(same_b, key_valid[None, :])
    mask2d = jnp.where(valid, 0.0, -10000.0).astype(jnp.float32)    # [B*S, B*S]

    inputs = [
        emb, mask2d, params["emb_ln_g"], params["emb_ln_b"],
        params["w_qkv"], params["b_qkv"], params["w_o"], params["b_o"],
        params["w_i"], params["b_i"], params["w_f"], params["b_f"],
        params["ln1_g"], params["ln1_b"], params["ln2_g"], params["ln2_b"],
        params["pool_w"], params["pool_b"], params["out_w"], params["out_b"],
    ]
    out_shape = jax.ShapeDtypeStruct((B, OUT_PAD), jnp.float32)
    kern = functools.partial(_fused_forward_kernel, batch=B, seq=S)

    probs_padded = pl.pallas_call(
        kern,
        out_shape=out_shape,
        grid=(1,),
        in_specs=[_full_spec(x.shape) for x in inputs],
        out_specs=_full_spec((B, OUT_PAD)),
        compiler_params=pltpu.CompilerParams(dimension_semantics=("arbitrary",)),
    )(*inputs)

    # padded classes carry exactly-zero probability (exp underflow), so this
    # slice is already normalized over the real classes.
    return probs_padded[:, :NUM_CLASSES]


# ---------------------------------- main ----------------------------------------
if __name__ == "__main__":
    key = jax.random.PRNGKey(0)
    k_param, k_ids = jax.random.split(key)

    B, S = 2, 8
    params = init_params(k_param)
    input_ids = jax.random.randint(k_ids, (B, S), 0, VOCAB, dtype=jnp.int32)
    attention_mask = jnp.ones((B, S), dtype=jnp.int32)

    probs = senti_reader_forward(params, input_ids, attention_mask)
    probs = jax.block_until_ready(probs)

    assert probs.shape == (B, NUM_CLASSES)
    assert bool(jnp.all(jnp.isfinite(probs)))
    assert bool(jnp.allclose(jnp.sum(probs, axis=1), 1.0, atol=1e-5))
    print("KERNEL_OK")
</pallas_src>

<mosaic_0001>
module attributes {stable_mosaic.version = 11 : i64} {
  func.func @_fused_forward_kernel(%arg0: i32, %arg1: memref<16x32xf32, #tpu.memory_space<vmem>>, %arg2: memref<16x16xf32, #tpu.memory_space<vmem>>, %arg3: memref<1x32xf32, #tpu.memory_space<vmem>>, %arg4: memref<1x32xf32, #tpu.memory_space<vmem>>, %arg5: memref<2x32x96xbf16, #tpu.memory_space<vmem>>, %arg6: memref<2x1x96xf32, #tpu.memory_space<vmem>>, %arg7: memref<2x32x32xbf16, #tpu.memory_space<vmem>>, %arg8: memref<2x1x32xf32, #tpu.memory_space<vmem>>, %arg9: memref<2x32x64xbf16, #tpu.memory_space<vmem>>, %arg10: memref<2x1x64xf32, #tpu.memory_space<vmem>>, %arg11: memref<2x64x32xbf16, #tpu.memory_space<vmem>>, %arg12: memref<2x1x32xf32, #tpu.memory_space<vmem>>, %arg13: memref<2x1x32xf32, #tpu.memory_space<vmem>>, %arg14: memref<2x1x32xf32, #tpu.memory_space<vmem>>, %arg15: memref<2x1x32xf32, #tpu.memory_space<vmem>>, %arg16: memref<2x1x32xf32, #tpu.memory_space<vmem>>, %arg17: memref<32x32xbf16, #tpu.memory_space<vmem>>, %arg18: memref<1x32xf32, #tpu.memory_space<vmem>>, %arg19: memref<32x128xbf16, #tpu.memory_space<vmem>>, %arg20: memref<1x128xf32, #tpu.memory_space<vmem>>, %arg21: memref<2x128xf32, #tpu.memory_space<vmem>>) attributes {dimension_semantics = [#tpu.dimension_semantics<arbitrary>], iteration_bounds = array<i64: 1>, scalar_prefetch = 0 : i64, scratch_operands = 0 : i64, tpu.core_type = #tpu.core_type<tc>, window_params = [{pipeline_mode = #tpu.pipeline_mode<synchronous>, transform_indices = @transform_0, window_bounds = array<i64: 16, 32>}, {pipeline_mode = #tpu.pipeline_mode<synchronous>, transform_indices = @transform_1, window_bounds = array<i64: 16, 16>}, {pipeline_mode = #tpu.pipeline_mode<synchronous>, transform_indices = @transform_2, window_bounds = array<i64: 1, 32>}, {pipeline_mode = #tpu.pipeline_mode<synchronous>, transform_indices = @transform_3, window_bounds = array<i64: 1, 32>}, {pipeline_mode = #tpu.pipeline_mode<synchronous>, transform_indices = @transform_4, window_bounds = array<i64: 2, 32, 96>}, {pipeline_mode = #tpu.pipeline_mode<synchronous>, transform_indices = @transform_5, window_bounds = array<i64: 2, 1, 96>}, {pipeline_mode = #tpu.pipeline_mode<synchronous>, transform_indices = @transform_6, window_bounds = array<i64: 2, 32, 32>}, {pipeline_mode = #tpu.pipeline_mode<synchronous>, transform_indices = @transform_7, window_bounds = array<i64: 2, 1, 32>}, {pipeline_mode = #tpu.pipeline_mode<synchronous>, transform_indices = @transform_8, window_bounds = array<i64: 2, 32, 64>}, {pipeline_mode = #tpu.pipeline_mode<synchronous>, transform_indices = @transform_9, window_bounds = array<i64: 2, 1, 64>}, {pipeline_mode = #tpu.pipeline_mode<synchronous>, transform_indices = @transform_10, window_bounds = array<i64: 2, 64, 32>}, {pipeline_mode = #tpu.pipeline_mode<synchronous>, transform_indices = @transform_11, window_bounds = array<i64: 2, 1, 32>}, {pipeline_mode = #tpu.pipeline_mode<synchronous>, transform_indices = @transform_12, window_bounds = array<i64: 2, 1, 32>}, {pipeline_mode = #tpu.pipeline_mode<synchronous>, transform_indices = @transform_13, window_bounds = array<i64: 2, 1, 32>}, {pipeline_mode = #tpu.pipeline_mode<synchronous>, transform_indices = @transform_14, window_bounds = array<i64: 2, 1, 32>}, {pipeline_mode = #tpu.pipeline_mode<synchronous>, transform_indices = @transform_15, window_bounds = array<i64: 2, 1, 32>}, {pipeline_mode = #tpu.pipeline_mode<synchronous>, transform_indices = @transform_16, window_bounds = array<i64: 32, 32>}, {pipeline_mode = #tpu.pipeline_mode<synchronous>, transform_indices = @transform_17, window_bounds = array<i64: 1, 32>}, {pipeline_mode = #tpu.pipeline_mode<synchronous>, transform_indices = @transform_18, window_bounds = array<i64: 32, 128>}, {pipeline_mode = #tpu.pipeline_mode<synchronous>, transform_indices = @transform_19, window_bounds = array<i64: 1, 128>}, {pipeline_mode = #tpu.pipeline_mode<synchronous>, transform_indices = @transform_20, window_bounds = array<i64: 2, 128>}]} {
    %c0 = arith.constant 0 : index
    %c0_0 = arith.constant 0 : index
    %0 = vector.load %arg1[%c0, %c0_0] : memref<16x32xf32, #tpu.memory_space<vmem>>, vector<16x32xf32>
    %c0_1 = arith.constant 0 : index
    %c0_2 = arith.constant 0 : index
    %1 = vector.load %arg3[%c0_1, %c0_2] : memref<1x32xf32, #tpu.memory_space<vmem>>, vector<1x32xf32>
    %c0_3 = arith.constant 0 : index
    %c0_4 = arith.constant 0 : index
    %2 = vector.load %arg4[%c0_3, %c0_4] : memref<1x32xf32, #tpu.memory_space<vmem>>, vector<1x32xf32>
    %cst = arith.constant dense<0.000000e+00> : vector<16xf32>
    %3 = vector.multi_reduction <add>, %0, %cst [1] : vector<16x32xf32> to vector<16xf32>
    %4 = vector.shape_cast %3 : vector<16xf32> to vector<16x1xf32>
    %cst_5 = arith.constant 3.200000e+01 : f32
    %5 = vector.broadcast %cst_5 : f32 to vector<16x1xf32>
    %6 = arith.divf %4, %5 : vector<16x1xf32>
    %7 = vector.broadcast %6 : vector<16x1xf32> to vector<16x32xf32>
    %8 = arith.subf %0, %7 : vector<16x32xf32>
    %9 = arith.mulf %8, %8 : vector<16x32xf32>
    %cst_6 = arith.constant dense<0.000000e+00> : vector<16xf32>
    %10 = vector.multi_reduction <add>, %9, %cst_6 [1] : vector<16x32xf32> to vector<16xf32>
    %11 = vector.shape_cast %10 : vector<16xf32> to vector<16x1xf32>
    %cst_7 = arith.constant 3.200000e+01 : f32
    %12 = vector.broadcast %cst_7 : f32 to vector<16x1xf32>
    %13 = arith.divf %11, %12 : vector<16x1xf32>
    %cst_8 = arith.constant 9.99999996E-13 : f32
    %14 = vector.broadcast %cst_8 : f32 to vector<16x1xf32>
    %15 = arith.addf %13, %14 : vector<16x1xf32>
    %16 = math.rsqrt %15 : vector<16x1xf32>
    %17 = vector.broadcast %16 : vector<16x1xf32> to vector<16x32xf32>
    %18 = arith.mulf %8, %17 : vector<16x32xf32>
    %19 = vector.broadcast %1 : vector<1x32xf32> to vector<16x32xf32>
    %20 = arith.mulf %18, %19 : vector<16x32xf32>
    %21 = vector.broadcast %2 : vector<1x32xf32> to vector<16x32xf32>
    %22 = arith.addf %20, %21 : vector<16x32xf32>
    %c0_9 = arith.constant 0 : index
    %c0_10 = arith.constant 0 : index
    %23 = vector.load %arg2[%c0_9, %c0_10] : memref<16x16xf32, #tpu.memory_space<vmem>>, vector<16x16xf32>
    %c0_11 = arith.constant 0 : index
    %c0_12 = arith.constant 0 : index
    %c0_13 = arith.constant 0 : index
    %24 = vector.load %arg5[%c0_11, %c0_12, %c0_13] : memref<2x32x96xbf16, #tpu.memory_space<vmem>>, vector<1x32x96xbf16>
    %25 = vector.shape_cast %24 : vector<1x32x96xbf16> to vector<32x96xbf16>
    %26 = arith.truncf %22 : vector<16x32xf32> to vector<16x32xbf16>
    %cst_14 = arith.constant dense<0.000000e+00> : vector<16x96xf32>
    %27 = tpu.matmul %26, %25, %cst_14 {dimension_numbers = #tpu.dot_dimension_numbers<[1], [0], [0], [1], [0, 0, 1, 1], [], []>} : vector<16x32xbf16>, vector<32x96xbf16>, vector<16x96xf32> -> vector<16x96xf32>
    %c0_15 = arith.constant 0 : index
    %c0_16 = arith.constant 0 : index
    %c0_17 = arith.constant 0 : index
    %28 = vector.load %arg6[%c0_15, %c0_16, %c0_17] : memref<2x1x96xf32, #tpu.memory_space<vmem>>, vector<1x1x96xf32>
    %29 = vector.shape_cast %28 : vector<1x1x96xf32> to vector<1x96xf32>
    %30 = vector.broadcast %29 : vector<1x96xf32> to vector<16x96xf32>
    %31 = arith.addf %27, %30 : vector<16x96xf32>
    %32 = vector.extract_strided_slice %31 {offsets = [0, 0], sizes = [16, 16], strides = [1, 1]} : vector<16x96xf32> to vector<16x16xf32>
    %33 = vector.extract_strided_slice %31 {offsets = [0, 32], sizes = [16, 16], strides = [1, 1]} : vector<16x96xf32> to vector<16x16xf32>
    %34 = vector.extract_strided_slice %31 {offsets = [0, 64], sizes = [16, 16], strides = [1, 1]} : vector<16x96xf32> to vector<16x16xf32>
    %35 = arith.truncf %32 : vector<16x16xf32> to vector<16x16xbf16>
    %36 = arith.truncf %33 : vector<16x16xf32> to vector<16x16xbf16>
    %cst_18 = arith.constant dense<0.000000e+00> : vector<16x16xf32>
    %37 = tpu.matmul %35, %36, %cst_18 {dimension_numbers = #tpu.dot_dimension_numbers<[1], [1], [0], [0], [0, 0, 1, 0], [], []>} : vector<16x16xbf16>, vector<16x16xbf16>, vector<16x16xf32> -> vector<16x16xf32>
    %38 = arith.addf %37, %23 : vector<16x16xf32>
    %cst_19 = arith.constant dense<0xFF800000> : vector<16xf32>
    %39 = vector.multi_reduction <maximumf>, %38, %cst_19 [1] : vector<16x16xf32> to vector<16xf32>
    %40 = vector.shape_cast %39 : vector<16xf32> to vector<16x1xf32>
    %41 = vector.broadcast %40 : vector<16x1xf32> to vector<16x16xf32>
    %42 = arith.subf %38, %41 : vector<16x16xf32>
    %43 = math.exp %42 : vector<16x16xf32>
    %cst_20 = arith.constant dense<0.000000e+00> : vector<16xf32>
    %44 = vector.multi_reduction <add>, %43, %cst_20 [1] : vector<16x16xf32> to vector<16xf32>
    %45 = vector.shape_cast %44 : vector<16xf32> to vector<16x1xf32>
    %46 = tpu.reciprocal %45 {approx = true} : vector<16x1xf32> -> vector<16x1xf32>
    %47 = vector.broadcast %46 : vector<16x1xf32> to vector<16x16xf32>
    %48 = arith.mulf %43, %47 : vector<16x16xf32>
    %49 = arith.truncf %48 : vector<16x16xf32> to vector<16x16xbf16>
    %50 = arith.truncf %34 : vector<16x16xf32> to vector<16x16xbf16>
    %cst_21 = arith.constant dense<0.000000e+00> : vector<16x16xf32>
    %51 = tpu.matmul %49, %50, %cst_21 {dimension_numbers = #tpu.dot_dimension_numbers<[1], [0], [0], [1], [0, 0, 1, 1], [], []>} : vector<16x16xbf16>, vector<16x16xbf16>, vector<16x16xf32> -> vector<16x16xf32>
    %52 = vector.extract_strided_slice %31 {offsets = [0, 16], sizes = [16, 16], strides = [1, 1]} : vector<16x96xf32> to vector<16x16xf32>
    %53 = vector.extract_strided_slice %31 {offsets = [0, 48], sizes = [16, 16], strides = [1, 1]} : vector<16x96xf32> to vector<16x16xf32>
    %54 = vector.extract_strided_slice %31 {offsets = [0, 80], sizes = [16, 16], strides = [1, 1]} : vector<16x96xf32> to vector<16x16xf32>
    %55 = arith.truncf %52 : vector<16x16xf32> to vector<16x16xbf16>
    %56 = arith.truncf %53 : vector<16x16xf32> to vector<16x16xbf16>
    %cst_22 = arith.constant dense<0.000000e+00> : vector<16x16xf32>
    %57 = tpu.matmul %55, %56, %cst_22 {dimension_numbers = #tpu.dot_dimension_numbers<[1], [1], [0], [0], [0, 0, 1, 0], [], []>} : vector<16x16xbf16>, vector<16x16xbf16>, vector<16x16xf32> -> vector<16x16xf32>
    %58 = arith.addf %57, %23 : vector<16x16xf32>
    %cst_23 = arith.constant dense<0xFF800000> : vector<16xf32>
    %59 = vector.multi_reduction <maximumf>, %58, %cst_23 [1] : vector<16x16xf32> to vector<16xf32>
    %60 = vector.shape_cast %59 : vector<16xf32> to vector<16x1xf32>
    %61 = vector.broadcast %60 : vector<16x1xf32> to vector<16x16xf32>
    %62 = arith.subf %58, %61 : vector<16x16xf32>
    %63 = math.exp %62 : vector<16x16xf32>
    %cst_24 = arith.constant dense<0.000000e+00> : vector<16xf32>
    %64 = vector.multi_reduction <add>, %63, %cst_24 [1] : vector<16x16xf32> to vector<16xf32>
    %65 = vector.shape_cast %64 : vector<16xf32> to vector<16x1xf32>
    %66 = tpu.reciprocal %65 {approx = true} : vector<16x1xf32> -> vector<16x1xf32>
    %67 = vector.broadcast %66 : vector<16x1xf32> to vector<16x16xf32>
    %68 = arith.mulf %63, %67 : vector<16x16xf32>
    %69 = arith.truncf %68 : vector<16x16xf32> to vector<16x16xbf16>
    %70 = arith.truncf %54 : vector<16x16xf32> to vector<16x16xbf16>
    %cst_25 = arith.constant dense<0.000000e+00> : vector<16x16xf32>
    %71 = tpu.matmul %69, %70, %cst_25 {dimension_numbers = #tpu.dot_dimension_numbers<[1], [0], [0], [1], [0, 0, 1, 1], [], []>} : vector<16x16xbf16>, vector<16x16xbf16>, vector<16x16xf32> -> vector<16x16xf32>
    %72 = tpu.concatenate %51, %71 in 1 : vector<16x16xf32>, vector<16x16xf32> -> vector<16x32xf32>
    %c0_26 = arith.constant 0 : index
    %c0_27 = arith.constant 0 : index
    %c0_28 = arith.constant 0 : index
    %73 = vector.load %arg7[%c0_26, %c0_27, %c0_28] : memref<2x32x32xbf16, #tpu.memory_space<vmem>>, vector<1x32x32xbf16>
    %74 = vector.shape_cast %73 : vector<1x32x32xbf16> to vector<32x32xbf16>
    %75 = arith.truncf %72 : vector<16x32xf32> to vector<16x32xbf16>
    %cst_29 = arith.constant dense<0.000000e+00> : vector<16x32xf32>
    %76 = tpu.matmul %75, %74, %cst_29 {dimension_numbers = #tpu.dot_dimension_numbers<[1], [0], [0], [1], [0, 0, 1, 1], [], []>} : vector<16x32xbf16>, vector<32x32xbf16>, vector<16x32xf32> -> vector<16x32xf32>
    %c0_30 = arith.constant 0 : index
    %c0_31 = arith.constant 0 : index
    %c0_32 = arith.constant 0 : index
    %77 = vector.load %arg8[%c0_30, %c0_31, %c0_32] : memref<2x1x32xf32, #tpu.memory_space<vmem>>, vector<1x1x32xf32>
    %78 = vector.shape_cast %77 : vector<1x1x32xf32> to vector<1x32xf32>
    %79 = vector.broadcast %78 : vector<1x32xf32> to vector<16x32xf32>
    %80 = arith.addf %76, %79 : vector<16x32xf32>
    %81 = arith.addf %80, %22 : vector<16x32xf32>
    %c0_33 = arith.constant 0 : index
    %c0_34 = arith.constant 0 : index
    %c0_35 = arith.constant 0 : index
    %82 = vector.load %arg13[%c0_33, %c0_34, %c0_35] : memref<2x1x32xf32, #tpu.memory_space<vmem>>, vector<1x1x32xf32>
    %83 = vector.shape_cast %82 : vector<1x1x32xf32> to vector<1x32xf32>
    %c0_36 = arith.constant 0 : index
    %c0_37 = arith.constant 0 : index
    %c0_38 = arith.constant 0 : index
    %84 = vector.load %arg14[%c0_36, %c0_37, %c0_38] : memref<2x1x32xf32, #tpu.memory_space<vmem>>, vector<1x1x32xf32>
    %85 = vector.shape_cast %84 : vector<1x1x32xf32> to vector<1x32xf32>
    %cst_39 = arith.constant dense<0.000000e+00> : vector<16xf32>
    %86 = vector.multi_reduction <add>, %81, %cst_39 [1] : vector<16x32xf32> to vector<16xf32>
    %87 = vector.shape_cast %86 : vector<16xf32> to vector<16x1xf32>
    %cst_40 = arith.constant 3.200000e+01 : f32
    %88 = vector.broadcast %cst_40 : f32 to vector<16x1xf32>
    %89 = arith.divf %87, %88 : vector<16x1xf32>
    %90 = vector.broadcast %89 : vector<16x1xf32> to vector<16x32xf32>
    %91 = arith.subf %81, %90 : vector<16x32xf32>
    %92 = arith.mulf %91, %91 : vector<16x32xf32>
    %cst_41 = arith.constant dense<0.000000e+00> : vector<16xf32>
    %93 = vector.multi_reduction <add>, %92, %cst_41 [1] : vector<16x32xf32> to vector<16xf32>
    %94 = vector.shape_cast %93 : vector<16xf32> to vector<16x1xf32>
    %cst_42 = arith.constant 3.200000e+01 : f32
    %95 = vector.broadcast %cst_42 : f32 to vector<16x1xf32>
    %96 = arith.divf %94, %95 : vector<16x1xf32>
    %cst_43 = arith.constant 9.99999996E-13 : f32
    %97 = vector.broadcast %cst_43 : f32 to vector<16x1xf32>
    %98 = arith.addf %96, %97 : vector<16x1xf32>
    %99 = math.rsqrt %98 : vector<16x1xf32>
    %100 = vector.broadcast %99 : vector<16x1xf32> to vector<16x32xf32>
    %101 = arith.mulf %91, %100 : vector<16x32xf32>
    %102 = vector.broadcast %83 : vector<1x32xf32> to vector<16x32xf32>
    %103 = arith.mulf %101, %102 : vector<16x32xf32>
    %104 = vector.broadcast %85 : vector<1x32xf32> to vector<16x32xf32>
    %105 = arith.addf %103, %104 : vector<16x32xf32>
    %c0_44 = arith.constant 0 : index
    %c0_45 = arith.constant 0 : index
    %c0_46 = arith.constant 0 : index
    %106 = vector.load %arg9[%c0_44, %c0_45, %c0_46] : memref<2x32x64xbf16, #tpu.memory_space<vmem>>, vector<1x32x64xbf16>
    %107 = vector.shape_cast %106 : vector<1x32x64xbf16> to vector<32x64xbf16>
    %108 = arith.truncf %105 : vector<16x32xf32> to vector<16x32xbf16>
    %cst_47 = arith.constant dense<0.000000e+00> : vector<16x64xf32>
    %109 = tpu.matmul %108, %107, %cst_47 {dimension_numbers = #tpu.dot_dimension_numbers<[1], [0], [0], [1], [0, 0, 1, 1], [], []>} : vector<16x32xbf16>, vector<32x64xbf16>, vector<16x64xf32> -> vector<16x64xf32>
    %c0_48 = arith.constant 0 : index
    %c0_49 = arith.constant 0 : index
    %c0_50 = arith.constant 0 : index
    %110 = vector.load %arg10[%c0_48, %c0_49, %c0_50] : memref<2x1x64xf32, #tpu.memory_space<vmem>>, vector<1x1x64xf32>
    %111 = vector.shape_cast %110 : vector<1x1x64xf32> to vector<1x64xf32>
    %112 = vector.broadcast %111 : vector<1x64xf32> to vector<16x64xf32>
    %113 = arith.addf %109, %112 : vector<16x64xf32>
    %cst_51 = arith.constant 5.000000e-01 : f32
    %114 = vector.broadcast %cst_51 : f32 to vector<16x64xf32>
    %115 = arith.mulf %114, %113 : vector<16x64xf32>
    %cst_52 = arith.constant 4.471500e-02 : f32
    %116 = vector.broadcast %cst_52 : f32 to vector<16x64xf32>
    %117 = arith.mulf %116, %113 : vector<16x64xf32>
    %118 = arith.mulf %117, %113 : vector<16x64xf32>
    %119 = arith.mulf %118, %113 : vector<16x64xf32>
    %120 = arith.addf %113, %119 : vector<16x64xf32>
    %cst_53 = arith.constant 0.797884583 : f32
    %121 = vector.broadcast %cst_53 : f32 to vector<16x64xf32>
    %122 = arith.mulf %121, %120 : vector<16x64xf32>
    %123 = math.tanh %122 : vector<16x64xf32>
    %cst_54 = arith.constant 1.000000e+00 : f32
    %124 = vector.broadcast %cst_54 : f32 to vector<16x64xf32>
    %125 = arith.addf %124, %123 : vector<16x64xf32>
    %126 = arith.mulf %115, %125 : vector<16x64xf32>
    %c0_55 = arith.constant 0 : index
    %c0_56 = arith.constant 0 : index
    %c0_57 = arith.constant 0 : index
    %127 = vector.load %arg11[%c0_55, %c0_56, %c0_57] : memref<2x64x32xbf16, #tpu.memory_space<vmem>>, vector<1x64x32xbf16>
    %128 = vector.shape_cast %127 : vector<1x64x32xbf16> to vector<64x32xbf16>
    %129 = arith.truncf %126 : vector<16x64xf32> to vector<16x64xbf16>
    %cst_58 = arith.constant dense<0.000000e+00> : vector<16x32xf32>
    %130 = tpu.matmul %129, %128, %cst_58 {dimension_numbers = #tpu.dot_dimension_numbers<[1], [0], [0], [1], [0, 0, 1, 1], [], []>} : vector<16x64xbf16>, vector<64x32xbf16>, vector<16x32xf32> -> vector<16x32xf32>
    %c0_59 = arith.constant 0 : index
    %c0_60 = arith.constant 0 : index
    %c0_61 = arith.constant 0 : index
    %131 = vector.load %arg12[%c0_59, %c0_60, %c0_61] : memref<2x1x32xf32, #tpu.memory_space<vmem>>, vector<1x1x32xf32>
    %132 = vector.shape_cast %131 : vector<1x1x32xf32> to vector<1x32xf32>
    %133 = vector.broadcast %132 : vector<1x32xf32> to vector<16x32xf32>
    %134 = arith.addf %130, %133 : vector<16x32xf32>
    %135 = arith.addf %134, %105 : vector<16x32xf32>
    %c0_62 = arith.constant 0 : index
    %c0_63 = arith.constant 0 : index
    %c0_64 = arith.constant 0 : index
    %136 = vector.load %arg15[%c0_62, %c0_63, %c0_64] : memref<2x1x32xf32, #tpu.memory_space<vmem>>, vector<1x1x32xf32>
    %137 = vector.shape_cast %136 : vector<1x1x32xf32> to vector<1x32xf32>
    %c0_65 = arith.constant 0 : index
    %c0_66 = arith.constant 0 : index
    %c0_67 = arith.constant 0 : index
    %138 = vector.load %arg16[%c0_65, %c0_66, %c0_67] : memref<2x1x32xf32, #tpu.memory_space<vmem>>, vector<1x1x32xf32>
    %139 = vector.shape_cast %138 : vector<1x1x32xf32> to vector<1x32xf32>
    %cst_68 = arith.constant dense<0.000000e+00> : vector<16xf32>
    %140 = vector.multi_reduction <add>, %135, %cst_68 [1] : vector<16x32xf32> to vector<16xf32>
    %141 = vector.shape_cast %140 : vector<16xf32> to vector<16x1xf32>
    %cst_69 = arith.constant 3.200000e+01 : f32
    %142 = vector.broadcast %cst_69 : f32 to vector<16x1xf32>
    %143 = arith.divf %141, %142 : vector<16x1xf32>
    %144 = vector.broadcast %143 : vector<16x1xf32> to vector<16x32xf32>
    %145 = arith.subf %135, %144 : vector<16x32xf32>
    %146 = arith.mulf %145, %145 : vector<16x32xf32>
    %cst_70 = arith.constant dense<0.000000e+00> : vector<16xf32>
    %147 = vector.multi_reduction <add>, %146, %cst_70 [1] : vector<16x32xf32> to vector<16xf32>
    %148 = vector.shape_cast %147 : vector<16xf32> to vector<16x1xf32>
    %cst_71 = arith.constant 3.200000e+01 : f32
    %149 = vector.broadcast %cst_71 : f32 to vector<16x1xf32>
    %150 = arith.divf %148, %149 : vector<16x1xf32>
    %cst_72 = arith.constant 9.99999996E-13 : f32
    %151 = vector.broadcast %cst_72 : f32 to vector<16x1xf32>
    %152 = arith.addf %150, %151 : vector<16x1xf32>
    %153 = math.rsqrt %152 : vector<16x1xf32>
    %154 = vector.broadcast %153 : vector<16x1xf32> to vector<16x32xf32>
    %155 = arith.mulf %145, %154 : vector<16x32xf32>
    %156 = vector.broadcast %137 : vector<1x32xf32> to vector<16x32xf32>
    %157 = arith.mulf %155, %156 : vector<16x32xf32>
    %158 = vector.broadcast %139 : vector<1x32xf32> to vector<16x32xf32>
    %159 = arith.addf %157, %158 : vector<16x32xf32>
    %c1 = arith.constant 1 : index
    %c0_73 = arith.constant 0 : index
    %c0_74 = arith.constant 0 : index
    %160 = vector.load %arg5[%c1, %c0_73, %c0_74] : memref<2x32x96xbf16, #tpu.memory_space<vmem>>, vector<1x32x96xbf16>
    %161 = vector.shape_cast %160 : vector<1x32x96xbf16> to vector<32x96xbf16>
    %162 = arith.truncf %159 : vector<16x32xf32> to vector<16x32xbf16>
    %cst_75 = arith.constant dense<0.000000e+00> : vector<16x96xf32>
    %163 = tpu.matmul %162, %161, %cst_75 {dimension_numbers = #tpu.dot_dimension_numbers<[1], [0], [0], [1], [0, 0, 1, 1], [], []>} : vector<16x32xbf16>, vector<32x96xbf16>, vector<16x96xf32> -> vector<16x96xf32>
    %c1_76 = arith.constant 1 : index
    %c0_77 = arith.constant 0 : index
    %c0_78 = arith.constant 0 : index
    %164 = vector.load %arg6[%c1_76, %c0_77, %c0_78] : memref<2x1x96xf32, #tpu.memory_space<vmem>>, vector<1x1x96xf32>
    %165 = vector.shape_cast %164 : vector<1x1x96xf32> to vector<1x96xf32>
    %166 = vector.broadcast %165 : vector<1x96xf32> to vector<16x96xf32>
    %167 = arith.addf %163, %166 : vector<16x96xf32>
    %168 = vector.extract_strided_slice %167 {offsets = [0, 0], sizes = [16, 16], strides = [1, 1]} : vector<16x96xf32> to vector<16x16xf32>
    %169 = vector.extract_strided_slice %167 {offsets = [0, 32], sizes = [16, 16], strides = [1, 1]} : vector<16x96xf32> to vector<16x16xf32>
    %170 = vector.extract_strided_slice %167 {offsets = [0, 64], sizes = [16, 16], strides = [1, 1]} : vector<16x96xf32> to vector<16x16xf32>
    %171 = arith.truncf %168 : vector<16x16xf32> to vector<16x16xbf16>
    %172 = arith.truncf %169 : vector<16x16xf32> to vector<16x16xbf16>
    %cst_79 = arith.constant dense<0.000000e+00> : vector<16x16xf32>
    %173 = tpu.matmul %171, %172, %cst_79 {dimension_numbers = #tpu.dot_dimension_numbers<[1], [1], [0], [0], [0, 0, 1, 0], [], []>} : vector<16x16xbf16>, vector<16x16xbf16>, vector<16x16xf32> -> vector<16x16xf32>
    %174 = arith.addf %173, %23 : vector<16x16xf32>
    %cst_80 = arith.constant dense<0xFF800000> : vector<16xf32>
    %175 = vector.multi_reduction <maximumf>, %174, %cst_80 [1] : vector<16x16xf32> to vector<16xf32>
    %176 = vector.shape_cast %175 : vector<16xf32> to vector<16x1xf32>
    %177 = vector.broadcast %176 : vector<16x1xf32> to vector<16x16xf32>
    %178 = arith.subf %174, %177 : vector<16x16xf32>
    %179 = math.exp %178 : vector<16x16xf32>
    %cst_81 = arith.constant dense<0.000000e+00> : vector<16xf32>
    %180 = vector.multi_reduction <add>, %179, %cst_81 [1] : vector<16x16xf32> to vector<16xf32>
    %181 = vector.shape_cast %180 : vector<16xf32> to vector<16x1xf32>
    %182 = tpu.reciprocal %181 {approx = true} : vector<16x1xf32> -> vector<16x1xf32>
    %183 = vector.broadcast %182 : vector<16x1xf32> to vector<16x16xf32>
    %184 = arith.mulf %179, %183 : vector<16x16xf32>
    %185 = arith.truncf %184 : vector<16x16xf32> to vector<16x16xbf16>
    %186 = arith.truncf %170 : vector<16x16xf32> to vector<16x16xbf16>
    %cst_82 = arith.constant dense<0.000000e+00> : vector<16x16xf32>
    %187 = tpu.matmul %185, %186, %cst_82 {dimension_numbers = #tpu.dot_dimension_numbers<[1], [0], [0], [1], [0, 0, 1, 1], [], []>} : vector<16x16xbf16>, vector<16x16xbf16>, vector<16x16xf32> -> vector<16x16xf32>
    %188 = vector.extract_strided_slice %167 {offsets = [0, 16], sizes = [16, 16], strides = [1, 1]} : vector<16x96xf32> to vector<16x16xf32>
    %189 = vector.extract_strided_slice %167 {offsets = [0, 48], sizes = [16, 16], strides = [1, 1]} : vector<16x96xf32> to vector<16x16xf32>
    %190 = vector.extract_strided_slice %167 {offsets = [0, 80], sizes = [16, 16], strides = [1, 1]} : vector<16x96xf32> to vector<16x16xf32>
    %191 = arith.truncf %188 : vector<16x16xf32> to vector<16x16xbf16>
    %192 = arith.truncf %189 : vector<16x16xf32> to vector<16x16xbf16>
    %cst_83 = arith.constant dense<0.000000e+00> : vector<16x16xf32>
    %193 = tpu.matmul %191, %192, %cst_83 {dimension_numbers = #tpu.dot_dimension_numbers<[1], [1], [0], [0], [0, 0, 1, 0], [], []>} : vector<16x16xbf16>, vector<16x16xbf16>, vector<16x16xf32> -> vector<16x16xf32>
    %194 = arith.addf %193, %23 : vector<16x16xf32>
    %cst_84 = arith.constant dense<0xFF800000> : vector<16xf32>
    %195 = vector.multi_reduction <maximumf>, %194, %cst_84 [1] : vector<16x16xf32> to vector<16xf32>
    %196 = vector.shape_cast %195 : vector<16xf32> to vector<16x1xf32>
    %197 = vector.broadcast %196 : vector<16x1xf32> to vector<16x16xf32>
    %198 = arith.subf %194, %197 : vector<16x16xf32>
    %199 = math.exp %198 : vector<16x16xf32>
    %cst_85 = arith.constant dense<0.000000e+00> : vector<16xf32>
    %200 = vector.multi_reduction <add>, %199, %cst_85 [1] : vector<16x16xf32> to vector<16xf32>
    %201 = vector.shape_cast %200 : vector<16xf32> to vector<16x1xf32>
    %202 = tpu.reciprocal %201 {approx = true} : vector<16x1xf32> -> vector<16x1xf32>
    %203 = vector.broadcast %202 : vector<16x1xf32> to vector<16x16xf32>
    %204 = arith.mulf %199, %203 : vector<16x16xf32>
    %205 = arith.truncf %204 : vector<16x16xf32> to vector<16x16xbf16>
    %206 = arith.truncf %190 : vector<16x16xf32> to vector<16x16xbf16>
    %cst_86 = arith.constant dense<0.000000e+00> : vector<16x16xf32>
    %207 = tpu.matmul %205, %206, %cst_86 {dimension_numbers = #tpu.dot_dimension_numbers<[1], [0], [0], [1], [0, 0, 1, 1], [], []>} : vector<16x16xbf16>, vector<16x16xbf16>, vector<16x16xf32> -> vector<16x16xf32>
    %208 = tpu.concatenate %187, %207 in 1 : vector<16x16xf32>, vector<16x16xf32> -> vector<16x32xf32>
    %c1_87 = arith.constant 1 : index
    %c0_88 = arith.constant 0 : index
    %c0_89 = arith.constant 0 : index
    %209 = vector.load %arg7[%c1_87, %c0_88, %c0_89] : memref<2x32x32xbf16, #tpu.memory_space<vmem>>, vector<1x32x32xbf16>
    %210 = vector.shape_cast %209 : vector<1x32x32xbf16> to vector<32x32xbf16>
    %211 = arith.truncf %208 : vector<16x32xf32> to vector<16x32xbf16>
    %cst_90 = arith.constant dense<0.000000e+00> : vector<16x32xf32>
    %212 = tpu.matmul %211, %210, %cst_90 {dimension_numbers = #tpu.dot_dimension_numbers<[1], [0], [0], [1], [0, 0, 1, 1], [], []>} : vector<16x32xbf16>, vector<32x32xbf16>, vector<16x32xf32> -> vector<16x32xf32>
    %c1_91 = arith.constant 1 : index
    %c0_92 = arith.constant 0 : index
    %c0_93 = arith.constant 0 : index
    %213 = vector.load %arg8[%c1_91, %c0_92, %c0_93] : memref<2x1x32xf32, #tpu.memory_space<vmem>>, vector<1x1x32xf32>
    %214 = vector.shape_cast %213 : vector<1x1x32xf32> to vector<1x32xf32>
    %215 = vector.broadcast %214 : vector<1x32xf32> to vector<16x32xf32>
    %216 = arith.addf %212, %215 : vector<16x32xf32>
    %217 = arith.addf %216, %159 : vector<16x32xf32>
    %c1_94 = arith.constant 1 : index
    %c0_95 = arith.constant 0 : index
    %c0_96 = arith.constant 0 : index
    %218 = vector.load %arg13[%c1_94, %c0_95, %c0_96] : memref<2x1x32xf32, #tpu.memory_space<vmem>>, vector<1x1x32xf32>
    %219 = vector.shape_cast %218 : vector<1x1x32xf32> to vector<1x32xf32>
    %c1_97 = arith.constant 1 : index
    %c0_98 = arith.constant 0 : index
    %c0_99 = arith.constant 0 : index
    %220 = vector.load %arg14[%c1_97, %c0_98, %c0_99] : memref<2x1x32xf32, #tpu.memory_space<vmem>>, vector<1x1x32xf32>
    %221 = vector.shape_cast %220 : vector<1x1x32xf32> to vector<1x32xf32>
    %cst_100 = arith.constant dense<0.000000e+00> : vector<16xf32>
    %222 = vector.multi_reduction <add>, %217, %cst_100 [1] : vector<16x32xf32> to vector<16xf32>
    %223 = vector.shape_cast %222 : vector<16xf32> to vector<16x1xf32>
    %cst_101 = arith.constant 3.200000e+01 : f32
    %224 = vector.broadcast %cst_101 : f32 to vector<16x1xf32>
    %225 = arith.divf %223, %224 : vector<16x1xf32>
    %226 = vector.broadcast %225 : vector<16x1xf32> to vector<16x32xf32>
    %227 = arith.subf %217, %226 : vector<16x32xf32>
    %228 = arith.mulf %227, %227 : vector<16x32xf32>
    %cst_102 = arith.constant dense<0.000000e+00> : vector<16xf32>
    %229 = vector.multi_reduction <add>, %228, %cst_102 [1] : vector<16x32xf32> to vector<16xf32>
    %230 = vector.shape_cast %229 : vector<16xf32> to vector<16x1xf32>
    %cst_103 = arith.constant 3.200000e+01 : f32
    %231 = vector.broadcast %cst_103 : f32 to vector<16x1xf32>
    %232 = arith.divf %230, %231 : vector<16x1xf32>
    %cst_104 = arith.constant 9.99999996E-13 : f32
    %233 = vector.broadcast %cst_104 : f32 to vector<16x1xf32>
    %234 = arith.addf %232, %233 : vector<16x1xf32>
    %235 = math.rsqrt %234 : vector<16x1xf32>
    %236 = vector.broadcast %235 : vector<16x1xf32> to vector<16x32xf32>
    %237 = arith.mulf %227, %236 : vector<16x32xf32>
    %238 = vector.broadcast %219 : vector<1x32xf32> to vector<16x32xf32>
    %239 = arith.mulf %237, %238 : vector<16x32xf32>
    %240 = vector.broadcast %221 : vector<1x32xf32> to vector<16x32xf32>
    %241 = arith.addf %239, %240 : vector<16x32xf32>
    %c1_105 = arith.constant 1 : index
    %c0_106 = arith.constant 0 : index
    %c0_107 = arith.constant 0 : index
    %242 = vector.load %arg9[%c1_105, %c0_106, %c0_107] : memref<2x32x64xbf16, #tpu.memory_space<vmem>>, vector<1x32x64xbf16>
    %243 = vector.shape_cast %242 : vector<1x32x64xbf16> to vector<32x64xbf16>
    %244 = arith.truncf %241 : vector<16x32xf32> to vector<16x32xbf16>
    %cst_108 = arith.constant dense<0.000000e+00> : vector<16x64xf32>
    %245 = tpu.matmul %244, %243, %cst_108 {dimension_numbers = #tpu.dot_dimension_numbers<[1], [0], [0], [1], [0, 0, 1, 1], [], []>} : vector<16x32xbf16>, vector<32x64xbf16>, vector<16x64xf32> -> vector<16x64xf32>
    %c1_109 = arith.constant 1 : index
    %c0_110 = arith.constant 0 : index
    %c0_111 = arith.constant 0 : index
    %246 = vector.load %arg10[%c1_109, %c0_110, %c0_111] : memref<2x1x64xf32, #tpu.memory_space<vmem>>, vector<1x1x64xf32>
    %247 = vector.shape_cast %246 : vector<1x1x64xf32> to vector<1x64xf32>
    %248 = vector.broadcast %247 : vector<1x64xf32> to vector<16x64xf32>
    %249 = arith.addf %245, %248 : vector<16x64xf32>
    %cst_112 = arith.constant 5.000000e-01 : f32
    %250 = vector.broadcast %cst_112 : f32 to vector<16x64xf32>
    %251 = arith.mulf %250, %249 : vector<16x64xf32>
    %cst_113 = arith.constant 4.471500e-02 : f32
    %252 = vector.broadcast %cst_113 : f32 to vector<16x64xf32>
    %253 = arith.mulf %252, %249 : vector<16x64xf32>
    %254 = arith.mulf %253, %249 : vector<16x64xf32>
    %255 = arith.mulf %254, %249 : vector<16x64xf32>
    %256 = arith.addf %249, %255 : vector<16x64xf32>
    %cst_114 = arith.constant 0.797884583 : f32
    %257 = vector.broadcast %cst_114 : f32 to vector<16x64xf32>
    %258 = arith.mulf %257, %256 : vector<16x64xf32>
    %259 = math.tanh %258 : vector<16x64xf32>
    %cst_115 = arith.constant 1.000000e+00 : f32
    %260 = vector.broadcast %cst_115 : f32 to vector<16x64xf32>
    %261 = arith.addf %260, %259 : vector<16x64xf32>
    %262 = arith.mulf %251, %261 : vector<16x64xf32>
    %c1_116 = arith.constant 1 : index
    %c0_117 = arith.constant 0 : index
    %c0_118 = arith.constant 0 : index
    %263 = vector.load %arg11[%c1_116, %c0_117, %c0_118] : memref<2x64x32xbf16, #tpu.memory_space<vmem>>, vector<1x64x32xbf16>
    %264 = vector.shape_cast %263 : vector<1x64x32xbf16> to vector<64x32xbf16>
    %265 = arith.truncf %262 : vector<16x64xf32> to vector<16x64xbf16>
    %cst_119 = arith.constant dense<0.000000e+00> : vector<16x32xf32>
    %266 = tpu.matmul %265, %264, %cst_119 {dimension_numbers = #tpu.dot_dimension_numbers<[1], [0], [0], [1], [0, 0, 1, 1], [], []>} : vector<16x64xbf16>, vector<64x32xbf16>, vector<16x32xf32> -> vector<16x32xf32>
    %c1_120 = arith.constant 1 : index
    %c0_121 = arith.constant 0 : index
    %c0_122 = arith.constant 0 : index
    %267 = vector.load %arg12[%c1_120, %c0_121, %c0_122] : memref<2x1x32xf32, #tpu.memory_space<vmem>>, vector<1x1x32xf32>
    %268 = vector.shape_cast %267 : vector<1x1x32xf32> to vector<1x32xf32>
    %269 = vector.broadcast %268 : vector<1x32xf32> to vector<16x32xf32>
    %270 = arith.addf %266, %269 : vector<16x32xf32>
    %271 = arith.addf %270, %241 : vector<16x32xf32>
    %c1_123 = arith.constant 1 : index
    %c0_124 = arith.constant 0 : index
    %c0_125 = arith.constant 0 : index
    %272 = vector.load %arg15[%c1_123, %c0_124, %c0_125] : memref<2x1x32xf32, #tpu.memory_space<vmem>>, vector<1x1x32xf32>
    %273 = vector.shape_cast %272 : vector<1x1x32xf32> to vector<1x32xf32>
    %c1_126 = arith.constant 1 : index
    %c0_127 = arith.constant 0 : index
    %c0_128 = arith.constant 0 : index
    %274 = vector.load %arg16[%c1_126, %c0_127, %c0_128] : memref<2x1x32xf32, #tpu.memory_space<vmem>>, vector<1x1x32xf32>
    %275 = vector.shape_cast %274 : vector<1x1x32xf32> to vector<1x32xf32>
    %cst_129 = arith.constant dense<0.000000e+00> : vector<16xf32>
    %276 = vector.multi_reduction <add>, %271, %cst_129 [1] : vector<16x32xf32> to vector<16xf32>
    %277 = vector.shape_cast %276 : vector<16xf32> to vector<16x1xf32>
    %cst_130 = arith.constant 3.200000e+01 : f32
    %278 = vector.broadcast %cst_130 : f32 to vector<16x1xf32>
    %279 = arith.divf %277, %278 : vector<16x1xf32>
    %280 = vector.broadcast %279 : vector<16x1xf32> to vector<16x32xf32>
    %281 = arith.subf %271, %280 : vector<16x32xf32>
    %282 = arith.mulf %281, %281 : vector<16x32xf32>
    %cst_131 = arith.constant dense<0.000000e+00> : vector<16xf32>
    %283 = vector.multi_reduction <add>, %282, %cst_131 [1] : vector<16x32xf32> to vector<16xf32>
    %284 = vector.shape_cast %283 : vector<16xf32> to vector<16x1xf32>
    %cst_132 = arith.constant 3.200000e+01 : f32
    %285 = vector.broadcast %cst_132 : f32 to vector<16x1xf32>
    %286 = arith.divf %284, %285 : vector<16x1xf32>
    %cst_133 = arith.constant 9.99999996E-13 : f32
    %287 = vector.broadcast %cst_133 : f32 to vector<16x1xf32>
    %288 = arith.addf %286, %287 : vector<16x1xf32>
    %289 = math.rsqrt %288 : vector<16x1xf32>
    %290 = vector.broadcast %289 : vector<16x1xf32> to vector<16x32xf32>
    %291 = arith.mulf %281, %290 : vector<16x32xf32>
    %292 = vector.broadcast %273 : vector<1x32xf32> to vector<16x32xf32>
    %293 = arith.mulf %291, %292 : vector<16x32xf32>
    %294 = vector.broadcast %275 : vector<1x32xf32> to vector<16x32xf32>
    %295 = arith.addf %293, %294 : vector<16x32xf32>
    %296 = vector.extract_strided_slice %295 {offsets = [0, 0], sizes = [1, 32], strides = [1, 1]} : vector<16x32xf32> to vector<1x32xf32>
    %297 = vector.extract_strided_slice %295 {offsets = [8, 0], sizes = [1, 32], strides = [1, 1]} : vector<16x32xf32> to vector<1x32xf32>
    %298 = tpu.concatenate %296, %297 in 0 : vector<1x32xf32>, vector<1x32xf32> -> vector<2x32xf32>
    %c0_134 = arith.constant 0 : index
    %c0_135 = arith.constant 0 : index
    %299 = vector.load %arg17[%c0_134, %c0_135] : memref<32x32xbf16, #tpu.memory_space<vmem>>, vector<32x32xbf16>
    %300 = arith.truncf %298 : vector<2x32xf32> to vector<2x32xbf16>
    %cst_136 = arith.constant dense<0.000000e+00> : vector<2x32xf32>
    %301 = tpu.matmul %300, %299, %cst_136 {dimension_numbers = #tpu.dot_dimension_numbers<[1], [0], [0], [1], [0, 0, 1, 1], [], []>} : vector<2x32xbf16>, vector<32x32xbf16>, vector<2x32xf32> -> vector<2x32xf32>
    %c0_137 = arith.constant 0 : index
    %c0_138 = arith.constant 0 : index
    %302 = vector.load %arg18[%c0_137, %c0_138] : memref<1x32xf32, #tpu.memory_space<vmem>>, vector<1x32xf32>
    %303 = vector.broadcast %302 : vector<1x32xf32> to vector<2x32xf32>
    %304 = arith.addf %301, %303 : vector<2x32xf32>
    %305 = math.tanh %304 : vector<2x32xf32>
    %c0_139 = arith.constant 0 : index
    %c0_140 = arith.constant 0 : index
    %306 = vector.load %arg19[%c0_139, %c0_140] : memref<32x128xbf16, #tpu.memory_space<vmem>>, vector<32x128xbf16>
    %307 = arith.truncf %305 : vector<2x32xf32> to vector<2x32xbf16>
    %cst_141 = arith.constant dense<0.000000e+00> : vector<2x128xf32>
    %308 = tpu.matmul %307, %306, %cst_141 {dimension_numbers = #tpu.dot_dimension_numbers<[1], [0], [0], [1], [0, 0, 1, 1], [], []>} : vector<2x32xbf16>, vector<32x128xbf16>, vector<2x128xf32> -> vector<2x128xf32>
    %c0_142 = arith.constant 0 : index
    %c0_143 = arith.constant 0 : index
    %309 = vector.load %arg20[%c0_142, %c0_143] : memref<1x128xf32, #tpu.memory_space<vmem>>, vector<1x128xf32>
    %310 = vector.broadcast %309 : vector<1x128xf32> to vector<2x128xf32>
    %311 = arith.addf %308, %310 : vector<2x128xf32>
    %cst_144 = arith.constant dense<0xFF800000> : vector<2xf32>
    %312 = vector.multi_reduction <maximumf>, %311, %cst_144 [1] : vector<2x128xf32> to vector<2xf32>
    %313 = vector.shape_cast %312 : vector<2xf32> to vector<2x1xf32>
    %314 = vector.broadcast %313 : vector<2x1xf32> to vector<2x128xf32>
    %315 = arith.subf %311, %314 : vector<2x128xf32>
    %316 = math.exp %315 : vector<2x128xf32>
    %cst_145 = arith.constant dense<0.000000e+00> : vector<2xf32>
    %317 = vector.multi_reduction <add>, %316, %cst_145 [1] : vector<2x128xf32> to vector<2xf32>
    %318 = vector.shape_cast %317 : vector<2xf32> to vector<2x1xf32>
    %319 = vector.broadcast %318 : vector<2x1xf32> to vector<2x128xf32>
    %320 = arith.divf %316, %319 : vector<2x128xf32>
    %c0_146 = arith.constant 0 : index
    %c0_147 = arith.constant 0 : index
    %321 = vector.load %arg21[%c0_146, %c0_147] : memref<2x128xf32, #tpu.memory_space<vmem>>, vector<2x128xf32>
    tpu.vector_store %arg21[%c0_146, %c0_147], %320 {strides = array<i32>} : memref<2x128xf32, #tpu.memory_space<vmem>>, vector<2x128xf32>,
    return
  }
  func.func @transform_0(%arg0: i32) -> (i32, i32) {
    %c0_i32 = arith.constant 0 : i32
    %c0_i32_0 = arith.constant 0 : i32
    %c0_i32_1 = arith.constant 0 : i32
    return %c0_i32, %c0_i32_0 : i32, i32
  }
  func.func @transform_1(%arg0: i32) -> (i32, i32) {
    %c0_i32 = arith.constant 0 : i32
    %c0_i32_0 = arith.constant 0 : i32
    %c0_i32_1 = arith.constant 0 : i32
    return %c0_i32, %c0_i32_0 : i32, i32
  }
  func.func @transform_2(%arg0: i32) -> (i32, i32) {
    %c0_i32 = arith.constant 0 : i32
    %c0_i32_0 = arith.constant 0 : i32
    %c0_i32_1 = arith.constant 0 : i32
    return %c0_i32, %c0_i32_0 : i32, i32
  }
  func.func @transform_3(%arg0: i32) -> (i32, i32) {
    %c0_i32 = arith.constant 0 : i32
    %c0_i32_0 = arith.constant 0 : i32
    %c0_i32_1 = arith.constant 0 : i32
    return %c0_i32, %c0_i32_0 : i32, i32
  }
  func.func @transform_4(%arg0: i32) -> (i32, i32, i32) {
    %c0_i32 = arith.constant 0 : i32
    %c0_i32_0 = arith.constant 0 : i32
    %c0_i32_1 = arith.constant 0 : i32
    %c0_i32_2 = arith.constant 0 : i32
    return %c0_i32, %c0_i32_0, %c0_i32_1 : i32, i32, i32
  }
  func.func @transform_5(%arg0: i32) -> (i32, i32, i32) {
    %c0_i32 = arith.constant 0 : i32
    %c0_i32_0 = arith.constant 0 : i32
    %c0_i32_1 = arith.constant 0 : i32
    %c0_i32_2 = arith.constant 0 : i32
    return %c0_i32, %c0_i32_0, %c0_i32_1 : i32, i32, i32
  }
  func.func @transform_6(%arg0: i32) -> (i32, i32, i32) {
    %c0_i32 = arith.constant 0 : i32
    %c0_i32_0 = arith.constant 0 : i32
    %c0_i32_1 = arith.constant 0 : i32
    %c0_i32_2 = arith.constant 0 : i32
    return %c0_i32, %c0_i32_0, %c0_i32_1 : i32, i32, i32
  }
  func.func @transform_7(%arg0: i32) -> (i32, i32, i32) {
    %c0_i32 = arith.constant 0 : i32
    %c0_i32_0 = arith.constant 0 : i32
    %c0_i32_1 = arith.constant 0 : i32
    %c0_i32_2 = arith.constant 0 : i32
    return %c0_i32, %c0_i32_0, %c0_i32_1 : i32, i32, i32
  }
  func.func @transform_8(%arg0: i32) -> (i32, i32, i32) {
    %c0_i32 = arith.constant 0 : i32
    %c0_i32_0 = arith.constant 0 : i32
    %c0_i32_1 = arith.constant 0 : i32
    %c0_i32_2 = arith.constant 0 : i32
    return %c0_i32, %c0_i32_0, %c0_i32_1 : i32, i32, i32
  }
  func.func @transform_9(%arg0: i32) -> (i32, i32, i32) {
    %c0_i32 = arith.constant 0 : i32
    %c0_i32_0 = arith.constant 0 : i32
    %c0_i32_1 = arith.constant 0 : i32
    %c0_i32_2 = arith.constant 0 : i32
    return %c0_i32, %c0_i32_0, %c0_i32_1 : i32, i32, i32
  }
  func.func @transform_10(%arg0: i32) -> (i32, i32, i32) {
    %c0_i32 = arith.constant 0 : i32
    %c0_i32_0 = arith.constant 0 : i32
    %c0_i32_1 = arith.constant 0 : i32
    %c0_i32_2 = arith.constant 0 : i32
    return %c0_i32, %c0_i32_0, %c0_i32_1 : i32, i32, i32
  }
  func.func @transform_11(%arg0: i32) -> (i32, i32, i32) {
    %c0_i32 = arith.constant 0 : i32
    %c0_i32_0 = arith.constant 0 : i32
    %c0_i32_1 = arith.constant 0 : i32
    %c0_i32_2 = arith.constant 0 : i32
    return %c0_i32, %c0_i32_0, %c0_i32_1 : i32, i32, i32
  }
  func.func @transform_12(%arg0: i32) -> (i32, i32, i32) {
    %c0_i32 = arith.constant 0 : i32
    %c0_i32_0 = arith.constant 0 : i32
    %c0_i32_1 = arith.constant 0 : i32
    %c0_i32_2 = arith.constant 0 : i32
    return %c0_i32, %c0_i32_0, %c0_i32_1 : i32, i32, i32
  }
  func.func @transform_13(%arg0: i32) -> (i32, i32, i32) {
    %c0_i32 = arith.constant 0 : i32
    %c0_i32_0 = arith.constant 0 : i32
    %c0_i32_1 = arith.constant 0 : i32
    %c0_i32_2 = arith.constant 0 : i32
    return %c0_i32, %c0_i32_0, %c0_i32_1 : i32, i32, i32
  }
  func.func @transform_14(%arg0: i32) -> (i32, i32, i32) {
    %c0_i32 = arith.constant 0 : i32
    %c0_i32_0 = arith.constant 0 : i32
    %c0_i32_1 = arith.constant 0 : i32
    %c0_i32_2 = arith.constant 0 : i32
    return %c0_i32, %c0_i32_0, %c0_i32_1 : i32, i32, i32
  }
  func.func @transform_15(%arg0: i32) -> (i32, i32, i32) {
    %c0_i32 = arith.constant 0 : i32
    %c0_i32_0 = arith.constant 0 : i32
    %c0_i32_1 = arith.constant 0 : i32
    %c0_i32_2 = arith.constant 0 : i32
    return %c0_i32, %c0_i32_0, %c0_i32_1 : i32, i32, i32
  }
  func.func @transform_16(%arg0: i32) -> (i32, i32) {
    %c0_i32 = arith.constant 0 : i32
    %c0_i32_0 = arith.constant 0 : i32
    %c0_i32_1 = arith.constant 0 : i32
    return %c0_i32, %c0_i32_0 : i32, i32
  }
  func.func @transform_17(%arg0: i32) -> (i32, i32) {
    %c0_i32 = arith.constant 0 : i32
    %c0_i32_0 = arith.constant 0 : i32
    %c0_i32_1 = arith.constant 0 : i32
    return %c0_i32, %c0_i32_0 : i32, i32
  }
  func.func @transform_18(%arg0: i32) -> (i32, i32) {
    %c0_i32 = arith.constant 0 : i32
    %c0_i32_0 = arith.constant 0 : i32
    %c0_i32_1 = arith.constant 0 : i32
    return %c0_i32, %c0_i32_0 : i32, i32
  }
  func.func @transform_19(%arg0: i32) -> (i32, i32) {
    %c0_i32 = arith.constant 0 : i32
    %c0_i32_0 = arith.constant 0 : i32
    %c0_i32_1 = arith.constant 0 : i32
    return %c0_i32, %c0_i32_0 : i32, i32
  }
  func.func @transform_20(%arg0: i32) -> (i32, i32) {
    %c0_i32 = arith.constant 0 : i32
    %c0_i32_0 = arith.constant 0 : i32
    %c0_i32_1 = arith.constant 0 : i32
    return %c0_i32, %c0_i32_0 : i32, i32
  }
}

</mosaic_0001>

<llo_original>
// kernel: senti_reader_forward.1
$region0: #{senti_reader_forward.1}
  #allocation0 [shape = 'u32[]', space=smem, size = 0x4, offset = 0x4, fixed_abs, tag = 'smem constant byte address 0x4 - core index']
  #allocation1 [shape = 'u32[72,128]{1,0:T(1,128)}', space=vmem, size = 0x9000, scoped, tag = 'internal scratch']
  %s0 = inlined_call_operand.vmem [shape: f32[16,32], index: 0, kind: input, shape index: {}]
  %s1 = inlined_call_operand.vmem [shape: f32[16,16], index: 1, kind: input, shape index: {}]
  %s2 = inlined_call_operand.vmem [shape: f32[1,32], index: 2, kind: input, shape index: {}]
  %s3 = inlined_call_operand.vmem [shape: f32[1,32], index: 3, kind: input, shape index: {}]
  %s4 = inlined_call_operand.vmem [shape: bf16[2,32,96], index: 4, kind: input, shape index: {}]
  %s5 = inlined_call_operand.vmem [shape: f32[2,1,96], index: 5, kind: input, shape index: {}]
  %s6 = inlined_call_operand.vmem [shape: bf16[2,32,32], index: 6, kind: input, shape index: {}]
  %s7 = inlined_call_operand.vmem [shape: f32[2,1,32], index: 7, kind: input, shape index: {}]
  %s8 = inlined_call_operand.vmem [shape: bf16[2,32,64], index: 8, kind: input, shape index: {}]
  %s9 = inlined_call_operand.vmem [shape: f32[2,1,64], index: 9, kind: input, shape index: {}]
  %s10 = inlined_call_operand.vmem [shape: bf16[2,64,32], index: 10, kind: input, shape index: {}]
  %s11 = inlined_call_operand.vmem [shape: f32[2,1,32], index: 11, kind: input, shape index: {}]
  %s12 = inlined_call_operand.vmem [shape: f32[2,1,32], index: 12, kind: input, shape index: {}]
  %s13 = inlined_call_operand.vmem [shape: f32[2,1,32], index: 13, kind: input, shape index: {}]
  %s14 = inlined_call_operand.vmem [shape: f32[2,1,32], index: 14, kind: input, shape index: {}]
  %s15 = inlined_call_operand.vmem [shape: f32[2,1,32], index: 15, kind: input, shape index: {}]
  %s16 = inlined_call_operand.vmem [shape: bf16[32,32], index: 16, kind: input, shape index: {}]
  %s17 = inlined_call_operand.vmem [shape: f32[1,32], index: 17, kind: input, shape index: {}]
  %s18 = inlined_call_operand.vmem [shape: bf16[32,128], index: 18, kind: input, shape index: {}]
  %s19 = inlined_call_operand.vmem [shape: f32[1,128], index: 19, kind: input, shape index: {}]
  %s20 = inlined_call_operand.hbm [shape: f32[2,128], index: 20, kind: output, shape index: {}]
  %s21 = sld [smem:[#allocation0]]
  $region90: #{senti_reader_forward.1} parent=0
    _
  %s23 = ssub.s32 1, %s21
  %s24 = scalar_select 0, %s23, %s21
  $region1: #{senti_reader_forward.1} parent=0
    #allocation2 [shape = 'u8[1024]{0}', space=vmem, size = 0x400, scoped, tag = 'output window, operand 0, single buffered']
    #allocation3 [shape = 's32[1]{0}', space=sflag, size = 0x4, scoped, tag = 'scoped memory for senti_reader_forward.1']
    %25 = vsyncpa [#allocation3], 0
    // Predicated region
    $region2: #{senti_reader_forward.1} parent=1 // pred_check
      _
    $region3: #{senti_reader_forward.1} parent=1 // pred_check_branch
      %27 = sbr.rel (0) target = $region5
    $region4: #{senti_reader_forward.1} parent=1 // pred_region
      _
    $region5: #{senti_reader_forward.1} parent=1 // pred_fallthru
      _
    // Predicated region
    $region6: #{senti_reader_forward.1} parent=1 // pred_check
      _
    $region7: #{senti_reader_forward.1} parent=1 // pred_check_branch
      %29 = sbr.rel (0) target = $region9
    $region8: #{senti_reader_forward.1} parent=1 // pred_region
      _
    $region9: #{senti_reader_forward.1} parent=1 // pred_fallthru
      _
    // Predicated region
    $region10: #{senti_reader_forward.1} parent=1 // pred_check
      _
    $region11: #{senti_reader_forward.1} parent=1 // pred_check_branch
      %31 = sbr.rel (0) target = $region13
    $region12: #{senti_reader_forward.1} parent=1 // pred_region
      _
    $region13: #{senti_reader_forward.1} parent=1 // pred_fallthru
      _
    // Predicated region
    $region14: #{senti_reader_forward.1} parent=1 // pred_check
      _
    $region15: #{senti_reader_forward.1} parent=1 // pred_check_branch
      %33 = sbr.rel (0) target = $region17
    $region16: #{senti_reader_forward.1} parent=1 // pred_region
      _
    $region17: #{senti_reader_forward.1} parent=1 // pred_fallthru
      _
    // Predicated region
    $region18: #{senti_reader_forward.1} parent=1 // pred_check
      _
    $region19: #{senti_reader_forward.1} parent=1 // pred_check_branch
      %35 = sbr.rel (0) target = $region21
    $region20: #{senti_reader_forward.1} parent=1 // pred_region
      _
    $region21: #{senti_reader_forward.1} parent=1 // pred_fallthru
      _
    // Predicated region
    $region22: #{senti_reader_forward.1} parent=1 // pred_check
      _
    $region23: #{senti_reader_forward.1} parent=1 // pred_check_branch
      %37 = sbr.rel (0) target = $region25
    $region24: #{senti_reader_forward.1} parent=1 // pred_region
      _
    $region25: #{senti_reader_forward.1} parent=1 // pred_fallthru
      _
    // Predicated region
    $region26: #{senti_reader_forward.1} parent=1 // pred_check
      _
    $region27: #{senti_reader_forward.1} parent=1 // pred_check_branch
      %39 = sbr.rel (0) target = $region29
    $region28: #{senti_reader_forward.1} parent=1 // pred_region
      _
    $region29: #{senti_reader_forward.1} parent=1 // pred_fallthru
      _
    // Predicated region
    $region30: #{senti_reader_forward.1} parent=1 // pred_check
      _
    $region31: #{senti_reader_forward.1} parent=1 // pred_check_branch
      %41 = sbr.rel (0) target = $region33
    $region32: #{senti_reader_forward.1} parent=1 // pred_region
      _
    $region33: #{senti_reader_forward.1} parent=1 // pred_fallthru
      _
    // Predicated region
    $region34: #{senti_reader_forward.1} parent=1 // pred_check
      _
    $region35: #{senti_reader_forward.1} parent=1 // pred_check_branch
      %43 = sbr.rel (0) target = $region37
    $region36: #{senti_reader_forward.1} parent=1 // pred_region
      _
    $region37: #{senti_reader_forward.1} parent=1 // pred_fallthru
      _
    // Predicated region
    $region38: #{senti_reader_forward.1} parent=1 // pred_check
      _
    $region39: #{senti_reader_forward.1} parent=1 // pred_check_branch
      %45 = sbr.rel (0) target = $region41
    $region40: #{senti_reader_forward.1} parent=1 // pred_region
      _
    $region41: #{senti_reader_forward.1} parent=1 // pred_fallthru
      _
    // Predicated region
    $region42: #{senti_reader_forward.1} parent=1 // pred_check
      _
    $region43: #{senti_reader_forward.1} parent=1 // pred_check_branch
      %47 = sbr.rel (0) target = $region45
    $region44: #{senti_reader_forward.1} parent=1 // pred_region
      _
    $region45: #{senti_reader_forward.1} parent=1 // pred_fallthru
      _
    // Predicated region
    $region46: #{senti_reader_forward.1} parent=1 // pred_check
      _
    $region47: #{senti_reader_forward.1} parent=1 // pred_check_branch
      %49 = sbr.rel (0) target = $region49
    $region48: #{senti_reader_forward.1} parent=1 // pred_region
      _
    $region49: #{senti_reader_forward.1} parent=1 // pred_fallthru
      _
    // Predicated region
    $region50: #{senti_reader_forward.1} parent=1 // pred_check
      _
    $region51: #{senti_reader_forward.1} parent=1 // pred_check_branch
      %51 = sbr.rel (0) target = $region53
    $region52: #{senti_reader_forward.1} parent=1 // pred_region
      _
    $region53: #{senti_reader_forward.1} parent=1 // pred_fallthru
      _
    // Predicated region
    $region54: #{senti_reader_forward.1} parent=1 // pred_check
      _
    $region55: #{senti_reader_forward.1} parent=1 // pred_check_branch
      %53 = sbr.rel (0) target = $region57
    $region56: #{senti_reader_forward.1} parent=1 // pred_region
      _
    $region57: #{senti_reader_forward.1} parent=1 // pred_fallthru
      _
    // Predicated region
    $region58: #{senti_reader_forward.1} parent=1 // pred_check
      _
    $region59: #{senti_reader_forward.1} parent=1 // pred_check_branch
      %55 = sbr.rel (0) target = $region61
    $region60: #{senti_reader_forward.1} parent=1 // pred_region
      _
    $region61: #{senti_reader_forward.1} parent=1 // pred_fallthru
      _
    // Predicated region
    $region62: #{senti_reader_forward.1} parent=1 // pred_check
      _
    $region63: #{senti_reader_forward.1} parent=1 // pred_check_branch
      %57 = sbr.rel (0) target = $region65
    $region64: #{senti_reader_forward.1} parent=1 // pred_region
      _
    $region65: #{senti_reader_forward.1} parent=1 // pred_fallthru
      _
    // Predicated region
    $region66: #{senti_reader_forward.1} parent=1 // pred_check
      _
    $region67: #{senti_reader_forward.1} parent=1 // pred_check_branch
      %59 = sbr.rel (0) target = $region69
    $region68: #{senti_reader_forward.1} parent=1 // pred_region
      _
    $region69: #{senti_reader_forward.1} parent=1 // pred_fallthru
      _
    // Predicated region
    $region70: #{senti_reader_forward.1} parent=1 // pred_check
      _
    $region71: #{senti_reader_forward.1} parent=1 // pred_check_branch
      %61 = sbr.rel (0) target = $region73
    $region72: #{senti_reader_forward.1} parent=1 // pred_region
      _
    $region73: #{senti_reader_forward.1} parent=1 // pred_fallthru
      _
    // Predicated region
    $region74: #{senti_reader_forward.1} parent=1 // pred_check
      _
    $region75: #{senti_reader_forward.1} parent=1 // pred_check_branch
      %63 = sbr.rel (0) target = $region77
    $region76: #{senti_reader_forward.1} parent=1 // pred_region
      _
    $region77: #{senti_reader_forward.1} parent=1 // pred_fallthru
      _
    // Predicated region
    $region78: #{senti_reader_forward.1} parent=1 // pred_check
      _
    $region79: #{senti_reader_forward.1} parent=1 // pred_check_branch
      %65 = sbr.rel (0) target = $region81
    $region80: #{senti_reader_forward.1} parent=1 // pred_region
      _
    $region81: #{senti_reader_forward.1} parent=1 // pred_fallthru
      _
    %v67 = vld [vmem:[%s0] sm:$0xff]
    %v68 = vld [vmem:[%s0 + $0x8] sm:$0xff]
    %v69 = vld [vmem:[%s2] sm:$0x1]
    %v70 = vld [vmem:[%s3] sm:$0x1]
    %vm71 = vcmask 261120
    %v72 = vsel %vm71, %v67, 0.0
    %73 = vadd.xlane.f32.xlu0 %v72
    %v74 = vpop.xlane.xlu0 %73
    %v75 = vsel %vm71, %v68, 0.0
    %76 = vadd.xlane.f32.xlu0 %v75
    %v77 = vpop.xlane.xlu0 %76
    %v78 = vrcp.pop 32.0
    %v79 = vmul.f32 32.0, %v78
    %v80 = vsub.f32 1.0, %v79
    %v81 = vmul.f32 %v78, %v80
    %v82 = vadd.f32 %v78, %v81
    %vm83 = vweird.f32 %v78
    %v84 = vsel %vm83, %v78, %v82
    %v85 = vmul.f32 %v74, %v84
    %v86 = vmul.f32 %v77, %v84
    %v87 = vsub.f32 %v67, %v85
    %v88 = vsub.f32 %v68, %v86
    %v89 = vmul.f32 %v87, %v87
    %v90 = vmul.f32 %v88, %v88
    %v91 = vsel %vm71, %v89, 0.0
    %92 = vadd.xlane.f32.xlu0 %v91
    %v93 = vpop.xlane.xlu0 %92
    %v94 = vsel %vm71, %v90, 0.0
    %95 = vadd.xlane.f32.xlu0 %v94
    %v96 = vpop.xlane.xlu0 %95
    %v97 = vmul.f32 %v93, %v84
    %v98 = vmul.f32 %v96, %v84
    %v99 = vadd.f32 %v97, 1e-12
    %v100 = vadd.f32 %v98, 1e-12
    %v101 = vrsqrt.pop %v99
    %v102 = vmul.f32 %v101, %v99
    %v103 = vmul.f32 %v102, %v101
    %v104 = vmul.f32 0.5, %v103
    %v105 = vsub.f32 1.5, %v104
    %v106 = vmul.f32 %v101, %v105
    %vm107 = vweird.f32 %v99
    %vm108 = vweird.f32 %v101
    %vm109 = vmor %vm107, %vm108
    %v110 = vsel %vm109, %v101, %v106
    %v111 = vrsqrt.pop %v100
    %v112 = vmul.f32 %v111, %v100
    %v113 = vmul.f32 %v112, %v111
    %v114 = vmul.f32 0.5, %v113
    %v115 = vsub.f32 1.5, %v114
    %v116 = vmul.f32 %v111, %v115
    %vm117 = vweird.f32 %v100
    %vm118 = vweird.f32 %v111
    %vm119 = vmor %vm117, %vm118
    %v120 = vsel %vm119, %v111, %v116
    %v121 = vmul.f32 %v87, %v110
    %v122 = vmul.f32 %v88, %v120
    %v124 = vperm.slane %v69, 0
    %v126 = vmul.f32 %v121, %v124
    %v127 = vmul.f32 %v122, %v124
    %v129 = vperm.slane %v70, 0
    %v131 = vadd.f32 %v126, %v129
    %v132 = vadd.f32 %v127, %v129
    %v133 = vld [vmem:[%s1] sm:$0xff]
    %v134 = vld [vmem:[%s1 + $0x8] sm:$0xff]
    %v135 = vld [vmem:[%s4] sm:$0xf]
    %v136 = vld [vmem:[%s4 + $0x4] sm:$0xf]
    %v137 = vld [vmem:[%s4 + $0x8] sm:$0xf]
    %v138 = vld [vmem:[%s4 + $0xc] sm:$0xf]
    %v139 = vpack.c.bf16 %v132, %v131
    %v140 = vld [vmem:[%s5] sm:$0x1]
    %v142 = vperm.slane %v140, 0
    %v148 = vunpack.c.l.b16 %v135
    %v149 = vunpack.c.l.b16 %v136
    %v150 = vunpack.c.l.b16 %v137
    %v151 = vunpack.c.l.b16 %v138
    %v152 = vpack.c.b16 %v149, %v148
    %v153 = vpack.c.b16 %v151, %v150
    %v157 = vsel %vm71, %v139, 0
    %159 = vmatpush.bf16.msra.mxu0 0
    %160 = vmatpush.bf16.msra.mxu0 0
    %161 = vmatpush.bf16.msra.mxu0 0
    %162 = vmatpush.bf16.msra.mxu0 0
    %163 = vmatpush.bf16.msra.mxu0 0
    %164 = vmatpush.bf16.msra.mxu0 0
    %165 = vmatpush.bf16.msra.mxu0 %v153
    %166 = vmatpush.bf16.msra.mxu0 %v152
    %167 = vmatmul.bf16.gmra.mxu0 %v157
    %v168 = vpop.f32.mrf.mxu0
    %v169 = vadd.f32 %v142, %v168
    %v170 = vpop.f32.mrf.mxu0
    %v171 = vadd.f32 %v142, %v170
    %172 = vdwg.mxu0
    %v173 = vpack.c.bf16 %v171, %v169
    %175 = vrot.lane.b32.xlu0 %v173, 96
    %v176 = vpop.permute.xlu0 %175
    %vm177 = vcmask 130048
    %v179 = vsel %vm177, %v173, 0
    %v182 = vsel %vm177, %v176, 0
    %184 = vmatpush.bf16.xpose.msra.mxu0 0
    %185 = vmatpush.bf16.xpose.msra.mxu0 0
    %186 = vmatpush.bf16.xpose.msra.mxu0 0
    %187 = vmatpush.bf16.xpose.msra.mxu0 0
    %188 = vmatpush.bf16.xpose.msra.mxu0 0
    %189 = vmatpush.bf16.xpose.msra.mxu0 0
    %190 = vmatpush.bf16.xpose.msra.mxu0 0
    %191 = vmatpush.bf16.xpose.msra.mxu0 %v182
    %192 = vmatmul.bf16.gmra.mxu0 %v179
    %v193 = vpop.f32.mrf.mxu0
    %v194 = vadd.f32 %v133, %v193
    %v195 = vpop.f32.mrf.mxu0
    %v196 = vadd.f32 %v134, %v195
    %197 = vdwg.mxu0
    %v198 = vsel %vm177, %v194, -inf
    %199 = vmax.xlane.f32.xlu0 %v198
    %v200 = vpop.xlane.xlu0 %199
    %v201 = vsel %vm177, %v196, -inf
    %202 = vmax.xlane.f32.xlu0 %v201
    %v203 = vpop.xlane.xlu0 %202
    %v204 = vsub.f32 %v194, %v200
    %v205 = vsub.f32 %v196, %v203
    %v206 = vmul.f32 %v204, 1.442695
    %v207 = vpow.pop %v206
    %v208 = vmul.f32 %v205, 1.442695
    %v209 = vpow.pop %v208
    %v210 = vsel %vm177, %v207, 0.0
    %211 = vadd.xlane.f32.xlu0 %v210
    %v212 = vpop.xlane.xlu0 %211
    %v213 = vsel %vm177, %v209, 0.0
    %214 = vadd.xlane.f32.xlu0 %v213
    %v215 = vpop.xlane.xlu0 %214
    %v216 = vrcp.pop %v212
    %v217 = vrcp.pop %v215
    %v218 = vmul.f32 %v207, %v216
    %v219 = vmul.f32 %v209, %v217
    %v220 = vpack.c.bf16 %v219, %v218
    %221 = vrot.lane.b32.xlu0 %v173, 64
    %v222 = vpop.permute.xlu0 %221
    %v225 = vsel %vm177, %v220, 0
    %227 = vmatpush.bf16.msra.mxu0 0
    %228 = vmatpush.bf16.msra.mxu0 0
    %229 = vmatpush.bf16.msra.mxu0 0
    %230 = vmatpush.bf16.msra.mxu0 0
    %231 = vmatpush.bf16.msra.mxu0 0
    %232 = vmatpush.bf16.msra.mxu0 0
    %233 = vmatpush.bf16.msra.mxu0 0
    %234 = vmatpush.bf16.msra.mxu0 %v222
    %235 = vmatmul.bf16.gmra.mxu0 %v225
    %v236 = vpop.f32.mrf.mxu0
    %v237 = vadd.f32 0.0, %v236
    %v238 = vpop.f32.mrf.mxu0
    %v239 = vadd.f32 0.0, %v238
    %240 = vdwg.mxu0
    %241 = vrot.lane.b32.xlu0 %v173, 112
    %v242 = vpop.permute.xlu0 %241
    %243 = vrot.lane.b32.xlu0 %v173, 80
    %v244 = vpop.permute.xlu0 %243
    %v246 = vsel %vm177, %v242, 0
    %v249 = vsel %vm177, %v244, 0
    %251 = vmatpush.bf16.xpose.msra.mxu0 0
    %252 = vmatpush.bf16.xpose.msra.mxu0 0
    %253 = vmatpush.bf16.xpose.msra.mxu0 0
    %254 = vmatpush.bf16.xpose.msra.mxu0 0
    %255 = vmatpush.bf16.xpose.msra.mxu0 0
    %256 = vmatpush.bf16.xpose.msra.mxu0 0
    %257 = vmatpush.bf16.xpose.msra.mxu0 0
    %258 = vmatpush.bf16.xpose.msra.mxu0 %v249
    %259 = vmatmul.bf16.gmra.mxu0 %v246
    %v260 = vpop.f32.mrf.mxu0
    %v261 = vadd.f32 %v133, %v260
    %v262 = vpop.f32.mrf.mxu0
    %v263 = vadd.f32 %v134, %v262
    %264 = vdwg.mxu0
    %v265 = vsel %vm177, %v261, -inf
    %266 = vmax.xlane.f32.xlu0 %v265
    %v267 = vpop.xlane.xlu0 %266
    %v268 = vsel %vm177, %v263, -inf
    %269 = vmax.xlane.f32.xlu0 %v268
    %v270 = vpop.xlane.xlu0 %269
    %v271 = vsub.f32 %v261, %v267
    %v272 = vsub.f32 %v263, %v270
    %v273 = vmul.f32 %v271, 1.442695
    %v274 = vpow.pop %v273
    %v275 = vmul.f32 %v272, 1.442695
    %v276 = vpow.pop %v275
    %v277 = vsel %vm177, %v274, 0.0
    %278 = vadd.xlane.f32.xlu0 %v277
    %v279 = vpop.xlane.xlu0 %278
    %v280 = vsel %vm177, %v276, 0.0
    %281 = vadd.xlane.f32.xlu0 %v280
    %v282 = vpop.xlane.xlu0 %281
    %v283 = vrcp.pop %v279
    %v284 = vrcp.pop %v282
    %v285 = vmul.f32 %v274, %v283
    %v286 = vmul.f32 %v276, %v284
    %v287 = vpack.c.bf16 %v286, %v285
    %288 = vrot.lane.b32.xlu0 %v173, 48
    %v289 = vpop.permute.xlu0 %288
    %v292 = vsel %vm177, %v287, 0
    %294 = vmatpush.bf16.msra.mxu0 0
    %295 = vmatpush.bf16.msra.mxu0 0
    %296 = vmatpush.bf16.msra.mxu0 0
    %297 = vmatpush.bf16.msra.mxu0 0
    %298 = vmatpush.bf16.msra.mxu0 0
    %299 = vmatpush.bf16.msra.mxu0 0
    %300 = vmatpush.bf16.msra.mxu0 0
    %301 = vmatpush.bf16.msra.mxu0 %v289
    %302 = vmatmul.bf16.gmra.mxu0 %v292
    %v303 = vpop.f32.mrf.mxu0
    %v304 = vadd.f32 0.0, %v303
    %v305 = vpop.f32.mrf.mxu0
    %v306 = vadd.f32 0.0, %v305
    %307 = vdwg.mxu0
    %310 = vrot.lane.b32.xlu0 %v304, 16
    %v311 = vpop.permute.xlu0 %310
    %312 = vrot.lane.b32.xlu0 %v306, 16
    %v313 = vpop.permute.xlu0 %312
    %v316 = vsel %vm177, %v237, %v311
    %v317 = vsel %vm177, %v239, %v313
    %v318 = vld [vmem:[%s6] sm:$0xf]
    %v319 = vld [vmem:[%s6 + $0x4] sm:$0xf]
    %v320 = vld [vmem:[%s6 + $0x8] sm:$0xf]
    %v321 = vld [vmem:[%s6 + $0xc] sm:$0xf]
    %v322 = vpack.c.bf16 %v317, %v316
    %v323 = vld [vmem:[%s7] sm:$0x1]
    %v325 = vperm.slane %v323, 0
    %v331 = vunpack.c.l.b16 %v318
    %v332 = vunpack.c.l.b16 %v319
    %v333 = vunpack.c.l.b16 %v320
    %v334 = vunpack.c.l.b16 %v321
    %v335 = vpack.c.b16 %v332, %v331
    %v336 = vpack.c.b16 %v334, %v333
    %v340 = vsel %vm71, %v322, 0
    %342 = vmatpush.bf16.msra.mxu0 0
    %343 = vmatpush.bf16.msra.mxu0 0
    %344 = vmatpush.bf16.msra.mxu0 0
    %345 = vmatpush.bf16.msra.mxu0 0
    %346 = vmatpush.bf16.msra.mxu0 0
    %347 = vmatpush.bf16.msra.mxu0 0
    %348 = vmatpush.bf16.msra.mxu0 %v336
    %349 = vmatpush.bf16.msra.mxu0 %v335
    %350 = vmatmul.bf16.gmra.mxu0 %v340
    %v351 = vpop.f32.mrf.mxu0
    %v352 = vadd.f32 %v325, %v351
    %v353 = vpop.f32.mrf.mxu0
    %v354 = vadd.f32 %v325, %v353
    %355 = vdwg.mxu0
    %v356 = vadd.f32 %v352, %v131
    %v357 = vadd.f32 %v354, %v132
    %v358 = vld [vmem:[%s12] sm:$0x1]
    %v359 = vld [vmem:[%s13] sm:$0x1]
    %v360 = vsel %vm71, %v356, 0.0
    %361 = vadd.xlane.f32.xlu0 %v360
    %v362 = vpop.xlane.xlu0 %361
    %v363 = vsel %vm71, %v357, 0.0
    %364 = vadd.xlane.f32.xlu0 %v363
    %v365 = vpop.xlane.xlu0 %364
    %v366 = vmul.f32 %v362, %v84
    %v367 = vmul.f32 %v365, %v84
    %v368 = vsub.f32 %v356, %v366
    %v369 = vsub.f32 %v357, %v367
    %v370 = vmul.f32 %v368, %v368
    %v371 = vmul.f32 %v369, %v369
    %v372 = vsel %vm71, %v370, 0.0
    %373 = vadd.xlane.f32.xlu0 %v372
    %v374 = vpop.xlane.xlu0 %373
    %v375 = vsel %vm71, %v371, 0.0
    %376 = vadd.xlane.f32.xlu0 %v375
    %v377 = vpop.xlane.xlu0 %376
    %v378 = vmul.f32 %v374, %v84
    %v379 = vmul.f32 %v377, %v84
    %v380 = vadd.f32 %v378, 1e-12
    %v381 = vadd.f32 %v379, 1e-12
    %v382 = vrsqrt.pop %v380
    %v383 = vmul.f32 %v382, %v380
    %v384 = vmul.f32 %v383, %v382
    %v385 = vmul.f32 0.5, %v384
    %v386 = vsub.f32 1.5, %v385
    %v387 = vmul.f32 %v382, %v386
    %vm388 = vweird.f32 %v380
    %vm389 = vweird.f32 %v382
    %vm390 = vmor %vm388, %vm389
    %v391 = vsel %vm390, %v382, %v387
    %v392 = vrsqrt.pop %v381
    %v393 = vmul.f32 %v392, %v381
    %v394 = vmul.f32 %v393, %v392
    %v395 = vmul.f32 0.5, %v394
    %v396 = vsub.f32 1.5, %v395
    %v397 = vmul.f32 %v392, %v396
    %vm398 = vweird.f32 %v381
    %vm399 = vweird.f32 %v392
    %vm400 = vmor %vm398, %vm399
    %v401 = vsel %vm400, %v392, %v397
    %v402 = vmul.f32 %v368, %v391
    %v403 = vmul.f32 %v369, %v401
    %v405 = vperm.slane %v358, 0
    %v407 = vmul.f32 %v402, %v405
    %v408 = vmul.f32 %v403, %v405
    %v410 = vperm.slane %v359, 0
    %v412 = vadd.f32 %v407, %v410
    %v413 = vadd.f32 %v408, %v410
    %v414 = vld [vmem:[%s8] sm:$0xf]
    %v415 = vld [vmem:[%s8 + $0x4] sm:$0xf]
    %v416 = vld [vmem:[%s8 + $0x8] sm:$0xf]
    %v417 = vld [vmem:[%s8 + $0xc] sm:$0xf]
    %v418 = vpack.c.bf16 %v413, %v412
    %v419 = vld [vmem:[%s9] sm:$0x1]
    %v421 = vperm.slane %v419, 0
    %v427 = vunpack.c.l.b16 %v414
    %v428 = vunpack.c.l.b16 %v415
    %v429 = vunpack.c.l.b16 %v416
    %v430 = vunpack.c.l.b16 %v417
    %v431 = vpack.c.b16 %v428, %v427
    %v432 = vpack.c.b16 %v430, %v429
    %v436 = vsel %vm71, %v418, 0
    %438 = vmatpush.bf16.msra.mxu0 0
    %439 = vmatpush.bf16.msra.mxu0 0
    %440 = vmatpush.bf16.msra.mxu0 0
    %441 = vmatpush.bf16.msra.mxu0 0
    %442 = vmatpush.bf16.msra.mxu0 0
    %443 = vmatpush.bf16.msra.mxu0 0
    %444 = vmatpush.bf16.msra.mxu0 %v432
    %445 = vmatpush.bf16.msra.mxu0 %v431
    %446 = vmatmul.bf16.gmra.mxu0 %v436
    %v447 = vpop.f32.mrf.mxu0
    %v448 = vadd.f32 %v421, %v447
    %v449 = vpop.f32.mrf.mxu0
    %v450 = vadd.f32 %v421, %v449
    %451 = vdwg.mxu0
    %v452 = vmul.f32 %v448, 0.5
    %v453 = vmul.f32 %v450, 0.5
    %v454 = vmul.f32 %v448, 0.044715
    %v455 = vmul.f32 %v450, 0.044715
    %v456 = vmul.f32 %v454, %v448
    %v457 = vmul.f32 %v455, %v450
    %v458 = vmul.f32 %v456, %v448
    %v459 = vmul.f32 %v457, %v450
    %v460 = vadd.f32 %v448, %v458
    %v461 = vadd.f32 %v450, %v459
    %v462 = vmul.f32 %v460, 0.7978846
    %v463 = vmul.f32 %v461, 0.7978846
    %v464 = vtanh.pop %v462
    %v465 = vtanh.pop %v463
    %v466 = vadd.f32 %v464, 1.0
    %v467 = vadd.f32 %v465, 1.0
    %v468 = vmul.f32 %v452, %v466
    %v469 = vmul.f32 %v453, %v467
    %v470 = vld [vmem:[%s10] sm:$0xf]
    %v471 = vld [vmem:[%s10 + $0x4] sm:$0xf]
    %v472 = vld [vmem:[%s10 + $0x8] sm:$0xf]
    %v473 = vld [vmem:[%s10 + $0xc] sm:$0xf]
    %v474 = vld [vmem:[%s10 + $0x10] sm:$0xf]
    %v475 = vld [vmem:[%s10 + $0x14] sm:$0xf]
    %v476 = vld [vmem:[%s10 + $0x18] sm:$0xf]
    %v477 = vld [vmem:[%s10 + $0x1c] sm:$0xf]
    %v478 = vpack.c.bf16 %v469, %v468
    %v479 = vld [vmem:[%s11] sm:$0x1]
    %v481 = vperm.slane %v479, 0
    %v491 = vunpack.c.l.b16 %v470
    %v492 = vunpack.c.l.b16 %v471
    %v493 = vunpack.c.l.b16 %v472
    %v494 = vunpack.c.l.b16 %v473
    %v495 = vunpack.c.l.b16 %v474
    %v496 = vunpack.c.l.b16 %v475
    %v497 = vunpack.c.l.b16 %v476
    %v498 = vunpack.c.l.b16 %v477
    %v499 = vpack.c.b16 %v492, %v491
    %v500 = vpack.c.b16 %v494, %v493
    %v501 = vpack.c.b16 %v496, %v495
    %v502 = vpack.c.b16 %v498, %v497
    %vm507 = vcmask 523264
    %v509 = vsel %vm507, %v478, 0
    %511 = vmatpush.bf16.msra.mxu0 0
    %512 = vmatpush.bf16.msra.mxu0 0
    %513 = vmatpush.bf16.msra.mxu0 0
    %514 = vmatpush.bf16.msra.mxu0 0
    %515 = vmatpush.bf16.msra.mxu0 %v502
    %516 = vmatpush.bf16.msra.mxu0 %v501
    %517 = vmatpush.bf16.msra.mxu0 %v500
    %518 = vmatpush.bf16.msra.mxu0 %v499
    %519 = vmatmul.bf16.gmra.mxu0 %v509
    %v520 = vpop.f32.mrf.mxu0
    %v521 = vadd.f32 %v481, %v520
    %v522 = vpop.f32.mrf.mxu0
    %v523 = vadd.f32 %v481, %v522
    %524 = vdwg.mxu0
    %v525 = vadd.f32 %v521, %v412
    %v526 = vadd.f32 %v523, %v413
    %v527 = vld [vmem:[%s14] sm:$0x1]
    %v528 = vld [vmem:[%s15] sm:$0x1]
    %v529 = vsel %vm71, %v525, 0.0
    %530 = vadd.xlane.f32.xlu0 %v529
    %v531 = vpop.xlane.xlu0 %530
    %v532 = vsel %vm71, %v526, 0.0
    %533 = vadd.xlane.f32.xlu0 %v532
    %v534 = vpop.xlane.xlu0 %533
    %v535 = vmul.f32 %v531, %v84
    %v536 = vmul.f32 %v534, %v84
    %v537 = vsub.f32 %v525, %v535
    %v538 = vsub.f32 %v526, %v536
    %v539 = vmul.f32 %v537, %v537
    %v540 = vmul.f32 %v538, %v538
    %v541 = vsel %vm71, %v539, 0.0
    %542 = vadd.xlane.f32.xlu0 %v541
    %v543 = vpop.xlane.xlu0 %542
    %v544 = vsel %vm71, %v540, 0.0
    %545 = vadd.xlane.f32.xlu0 %v544
    %v546 = vpop.xlane.xlu0 %545
    %v547 = vmul.f32 %v543, %v84
    %v548 = vmul.f32 %v546, %v84
    %v549 = vadd.f32 %v547, 1e-12
    %v550 = vadd.f32 %v548, 1e-12
    %v551 = vrsqrt.pop %v549
    %v552 = vmul.f32 %v551, %v549
    %v553 = vmul.f32 %v552, %v551
    %v554 = vmul.f32 0.5, %v553
    %v555 = vsub.f32 1.5, %v554
    %v556 = vmul.f32 %v551, %v555
    %vm557 = vweird.f32 %v549
    %vm558 = vweird.f32 %v551
    %vm559 = vmor %vm557, %vm558
    %v560 = vsel %vm559, %v551, %v556
    %v561 = vrsqrt.pop %v550
    %v562 = vmul.f32 %v561, %v550
    %v563 = vmul.f32 %v562, %v561
    %v564 = vmul.f32 0.5, %v563
    %v565 = vsub.f32 1.5, %v564
    %v566 = vmul.f32 %v561, %v565
    %vm567 = vweird.f32 %v550
    %vm568 = vweird.f32 %v561
    %vm569 = vmor %vm567, %vm568
    %v570 = vsel %vm569, %v561, %v566
    %v571 = vmul.f32 %v537, %v560
    %v572 = vmul.f32 %v538, %v570
    %v574 = vperm.slane %v527, 0
    %v576 = vmul.f32 %v571, %v574
    %v577 = vmul.f32 %v572, %v574
    %v579 = vperm.slane %v528, 0
    %v581 = vadd.f32 %v576, %v579
    %v582 = vadd.f32 %v577, %v579
    %s583 = scalar_lea.vmem %s4, 16
    %v584 = vld [vmem:[%s583] sm:$0xf]
    %v585 = vld [vmem:[%s583 + $0x4] sm:$0xf]
    %v586 = vld [vmem:[%s583 + $0x8] sm:$0xf]
    %v587 = vld [vmem:[%s583 + $0xc] sm:$0xf]
    %v588 = vpack.c.bf16 %v582, %v581
    %s589 = scalar_lea.vmem %s5, 1
    %v590 = vld [vmem:[%s589] sm:$0x1]
    %v592 = vperm.slane %v590, 0
    %v598 = vunpack.c.l.b16 %v584
    %v599 = vunpack.c.l.b16 %v585
    %v600 = vunpack.c.l.b16 %v586
    %v601 = vunpack.c.l.b16 %v587
    %v602 = vpack.c.b16 %v599, %v598
    %v603 = vpack.c.b16 %v601, %v600
    %v607 = vsel %vm71, %v588, 0
    %609 = vmatpush.bf16.msra.mxu0 0
    %610 = vmatpush.bf16.msra.mxu0 0
    %611 = vmatpush.bf16.msra.mxu0 0
    %612 = vmatpush.bf16.msra.mxu0 0
    %613 = vmatpush.bf16.msra.mxu0 0
    %614 = vmatpush.bf16.msra.mxu0 0
    %615 = vmatpush.bf16.msra.mxu0 %v603
    %616 = vmatpush.bf16.msra.mxu0 %v602
    %617 = vmatmul.bf16.gmra.mxu0 %v607
    %v618 = vpop.f32.mrf.mxu0
    %v619 = vadd.f32 %v592, %v618
    %v620 = vpop.f32.mrf.mxu0
    %v621 = vadd.f32 %v592, %v620
    %622 = vdwg.mxu0
    %v623 = vpack.c.bf16 %v621, %v619
    %625 = vrot.lane.b32.xlu0 %v623, 96
    %v626 = vpop.permute.xlu0 %625
    %v628 = vsel %vm177, %v623, 0
    %v631 = vsel %vm177, %v626, 0
    %633 = vmatpush.bf16.xpose.msra.mxu0 0
    %634 = vmatpush.bf16.xpose.msra.mxu0 0
    %635 = vmatpush.bf16.xpose.msra.mxu0 0
    %636 = vmatpush.bf16.xpose.msra.mxu0 0
    %637 = vmatpush.bf16.xpose.msra.mxu0 0
    %638 = vmatpush.bf16.xpose.msra.mxu0 0
    %639 = vmatpush.bf16.xpose.msra.mxu0 0
    %640 = vmatpush.bf16.xpose.msra.mxu0 %v631
    %641 = vmatmul.bf16.gmra.mxu0 %v628
    %v642 = vpop.f32.mrf.mxu0
    %v643 = vadd.f32 %v133, %v642
    %v644 = vpop.f32.mrf.mxu0
    %v645 = vadd.f32 %v134, %v644
    %646 = vdwg.mxu0
    %v647 = vsel %vm177, %v643, -inf
    %648 = vmax.xlane.f32.xlu0 %v647
    %v649 = vpop.xlane.xlu0 %648
    %v650 = vsel %vm177, %v645, -inf
    %651 = vmax.xlane.f32.xlu0 %v650
    %v652 = vpop.xlane.xlu0 %651
    %v653 = vsub.f32 %v643, %v649
    %v654 = vsub.f32 %v645, %v652
    %v655 = vmul.f32 %v653, 1.442695
    %v656 = vpow.pop %v655
    %v657 = vmul.f32 %v654, 1.442695
    %v658 = vpow.pop %v657
    %v659 = vsel %vm177, %v656, 0.0
    %660 = vadd.xlane.f32.xlu0 %v659
    %v661 = vpop.xlane.xlu0 %660
    %v662 = vsel %vm177, %v658, 0.0
    %663 = vadd.xlane.f32.xlu0 %v662
    %v664 = vpop.xlane.xlu0 %663
    %v665 = vrcp.pop %v661
    %v666 = vrcp.pop %v664
    %v667 = vmul.f32 %v656, %v665
    %v668 = vmul.f32 %v658, %v666
    %v669 = vpack.c.bf16 %v668, %v667
    %670 = vrot.lane.b32.xlu0 %v623, 64
    %v671 = vpop.permute.xlu0 %670
    %v674 = vsel %vm177, %v669, 0
    %676 = vmatpush.bf16.msra.mxu0 0
    %677 = vmatpush.bf16.msra.mxu0 0
    %678 = vmatpush.bf16.msra.mxu0 0
    %679 = vmatpush.bf16.msra.mxu0 0
    %680 = vmatpush.bf16.msra.mxu0 0
    %681 = vmatpush.bf16.msra.mxu0 0
    %682 = vmatpush.bf16.msra.mxu0 0
    %683 = vmatpush.bf16.msra.mxu0 %v671
    %684 = vmatmul.bf16.gmra.mxu0 %v674
    %v685 = vpop.f32.mrf.mxu0
    %v686 = vadd.f32 0.0, %v685
    %v687 = vpop.f32.mrf.mxu0
    %v688 = vadd.f32 0.0, %v687
    %689 = vdwg.mxu0
    %690 = vrot.lane.b32.xlu0 %v623, 112
    %v691 = vpop.permute.xlu0 %690
    %692 = vrot.lane.b32.xlu0 %v623, 80
    %v693 = vpop.permute.xlu0 %692
    %v695 = vsel %vm177, %v691, 0
    %v698 = vsel %vm177, %v693, 0
    %700 = vmatpush.bf16.xpose.msra.mxu0 0
    %701 = vmatpush.bf16.xpose.msra.mxu0 0
    %702 = vmatpush.bf16.xpose.msra.mxu0 0
    %703 = vmatpush.bf16.xpose.msra.mxu0 0
    %704 = vmatpush.bf16.xpose.msra.mxu0 0
    %705 = vmatpush.bf16.xpose.msra.mxu0 0
    %706 = vmatpush.bf16.xpose.msra.mxu0 0
    %707 = vmatpush.bf16.xpose.msra.mxu0 %v698
    %708 = vmatmul.bf16.gmra.mxu0 %v695
    %v709 = vpop.f32.mrf.mxu0
    %v710 = vadd.f32 %v133, %v709
    %v711 = vpop.f32.mrf.mxu0
    %v712 = vadd.f32 %v134, %v711
    %713 = vdwg.mxu0
    %v714 = vsel %vm177, %v710, -inf
    %715 = vmax.xlane.f32.xlu0 %v714
    %v716 = vpop.xlane.xlu0 %715
    %v717 = vsel %vm177, %v712, -inf
    %718 = vmax.xlane.f32.xlu0 %v717
    %v719 = vpop.xlane.xlu0 %718
    %v720 = vsub.f32 %v710, %v716
    %v721 = vsub.f32 %v712, %v719
    %v722 = vmul.f32 %v720, 1.442695
    %v723 = vpow.pop %v722
    %v724 = vmul.f32 %v721, 1.442695
    %v725 = vpow.pop %v724
    %v726 = vsel %vm177, %v723, 0.0
    %727 = vadd.xlane.f32.xlu0 %v726
    %v728 = vpop.xlane.xlu0 %727
    %v729 = vsel %vm177, %v725, 0.0
    %730 = vadd.xlane.f32.xlu0 %v729
    %v731 = vpop.xlane.xlu0 %730
    %v732 = vrcp.pop %v728
    %v733 = vrcp.pop %v731
    %v734 = vmul.f32 %v723, %v732
    %v735 = vmul.f32 %v725, %v733
    %v736 = vpack.c.bf16 %v735, %v734
    %737 = vrot.lane.b32.xlu0 %v623, 48
    %v738 = vpop.permute.xlu0 %737
    %v741 = vsel %vm177, %v736, 0
    %743 = vmatpush.bf16.msra.mxu0 0
    %744 = vmatpush.bf16.msra.mxu0 0
    %745 = vmatpush.bf16.msra.mxu0 0
    %746 = vmatpush.bf16.msra.mxu0 0
    %747 = vmatpush.bf16.msra.mxu0 0
    %748 = vmatpush.bf16.msra.mxu0 0
    %749 = vmatpush.bf16.msra.mxu0 0
    %750 = vmatpush.bf16.msra.mxu0 %v738
    %751 = vmatmul.bf16.gmra.mxu0 %v741
    %v752 = vpop.f32.mrf.mxu0
    %v753 = vadd.f32 0.0, %v752
    %v754 = vpop.f32.mrf.mxu0
    %v755 = vadd.f32 0.0, %v754
    %756 = vdwg.mxu0
    %759 = vrot.lane.b32.xlu0 %v753, 16
    %v760 = vpop.permute.xlu0 %759
    %761 = vrot.lane.b32.xlu0 %v755, 16
    %v762 = vpop.permute.xlu0 %761
    %v765 = vsel %vm177, %v686, %v760
    %v766 = vsel %vm177, %v688, %v762
    %s767 = scalar_lea.vmem %s6, 16
    %v768 = vld [vmem:[%s767] sm:$0xf]
    %v769 = vld [vmem:[%s767 + $0x4] sm:$0xf]
    %v770 = vld [vmem:[%s767 + $0x8] sm:$0xf]
    %v771 = vld [vmem:[%s767 + $0xc] sm:$0xf]
    %v772 = vpack.c.bf16 %v766, %v765
    %s773 = scalar_lea.vmem %s7, 1
    %v774 = vld [vmem:[%s773] sm:$0x1]
    %v776 = vperm.slane %v774, 0
    %v782 = vunpack.c.l.b16 %v768
    %v783 = vunpack.c.l.b16 %v769
    %v784 = vunpack.c.l.b16 %v770
    %v785 = vunpack.c.l.b16 %v771
    %v786 = vpack.c.b16 %v783, %v782
    %v787 = vpack.c.b16 %v785, %v784
    %v791 = vsel %vm71, %v772, 0
    %793 = vmatpush.bf16.msra.mxu0 0
    %794 = vmatpush.bf16.msra.mxu0 0
    %795 = vmatpush.bf16.msra.mxu0 0
    %796 = vmatpush.bf16.msra.mxu0 0
    %797 = vmatpush.bf16.msra.mxu0 0
    %798 = vmatpush.bf16.msra.mxu0 0
    %799 = vmatpush.bf16.msra.mxu0 %v787
    %800 = vmatpush.bf16.msra.mxu0 %v786
    %801 = vmatmul.bf16.gmra.mxu0 %v791
    %v802 = vpop.f32.mrf.mxu0
    %v803 = vadd.f32 %v776, %v802
    %v804 = vpop.f32.mrf.mxu0
    %v805 = vadd.f32 %v776, %v804
    %806 = vdwg.mxu0
    %v807 = vadd.f32 %v803, %v581
    %v808 = vadd.f32 %v805, %v582
    %s809 = scalar_lea.vmem %s12, 1
    %v810 = vld [vmem:[%s809] sm:$0x1]
    %s811 = scalar_lea.vmem %s13, 1
    %v812 = vld [vmem:[%s811] sm:$0x1]
    %v813 = vsel %vm71, %v807, 0.0
    %814 = vadd.xlane.f32.xlu0 %v813
    %v815 = vpop.xlane.xlu0 %814
    %v816 = vsel %vm71, %v808, 0.0
    %817 = vadd.xlane.f32.xlu0 %v816
    %v818 = vpop.xlane.xlu0 %817
    %v819 = vmul.f32 %v815, %v84
    %v820 = vmul.f32 %v818, %v84
    %v821 = vsub.f32 %v807, %v819
    %v822 = vsub.f32 %v808, %v820
    %v823 = vmul.f32 %v821, %v821
    %v824 = vmul.f32 %v822, %v822
    %v825 = vsel %vm71, %v823, 0.0
    %826 = vadd.xlane.f32.xlu0 %v825
    %v827 = vpop.xlane.xlu0 %826
    %v828 = vsel %vm71, %v824, 0.0
    %829 = vadd.xlane.f32.xlu0 %v828
    %v830 = vpop.xlane.xlu0 %829
    %v831 = vmul.f32 %v827, %v84
    %v832 = vmul.f32 %v830, %v84
    %v833 = vadd.f32 %v831, 1e-12
    %v834 = vadd.f32 %v832, 1e-12
    %v835 = vrsqrt.pop %v833
    %v836 = vmul.f32 %v835, %v833
    %v837 = vmul.f32 %v836, %v835
    %v838 = vmul.f32 0.5, %v837
    %v839 = vsub.f32 1.5, %v838
    %v840 = vmul.f32 %v835, %v839
    %vm841 = vweird.f32 %v833
    %vm842 = vweird.f32 %v835
    %vm843 = vmor %vm841, %vm842
    %v844 = vsel %vm843, %v835, %v840
    %v845 = vrsqrt.pop %v834
    %v846 = vmul.f32 %v845, %v834
    %v847 = vmul.f32 %v846, %v845
    %v848 = vmul.f32 0.5, %v847
    %v849 = vsub.f32 1.5, %v848
    %v850 = vmul.f32 %v845, %v849
    %vm851 = vweird.f32 %v834
    %vm852 = vweird.f32 %v845
    %vm853 = vmor %vm851, %vm852
    %v854 = vsel %vm853, %v845, %v850
    %v855 = vmul.f32 %v821, %v844
    %v856 = vmul.f32 %v822, %v854
    %v858 = vperm.slane %v810, 0
    %v860 = vmul.f32 %v855, %v858
    %v861 = vmul.f32 %v856, %v858
    %v863 = vperm.slane %v812, 0
    %v865 = vadd.f32 %v860, %v863
    %v866 = vadd.f32 %v861, %v863
    %s867 = scalar_lea.vmem %s8, 16
    %v868 = vld [vmem:[%s867] sm:$0xf]
    %v869 = vld [vmem:[%s867 + $0x4] sm:$0xf]
    %v870 = vld [vmem:[%s867 + $0x8] sm:$0xf]
    %v871 = vld [vmem:[%s867 + $0xc] sm:$0xf]
    %v872 = vpack.c.bf16 %v866, %v865
    %s873 = scalar_lea.vmem %s9, 1
    %v874 = vld [vmem:[%s873] sm:$0x1]
    %v876 = vperm.slane %v874, 0
    %v882 = vunpack.c.l.b16 %v868
    %v883 = vunpack.c.l.b16 %v869
    %v884 = vunpack.c.l.b16 %v870
    %v885 = vunpack.c.l.b16 %v871
    %v886 = vpack.c.b16 %v883, %v882
    %v887 = vpack.c.b16 %v885, %v884
    %v891 = vsel %vm71, %v872, 0
    %893 = vmatpush.bf16.msra.mxu0 0
    %894 = vmatpush.bf16.msra.mxu0 0
    %895 = vmatpush.bf16.msra.mxu0 0
    %896 = vmatpush.bf16.msra.mxu0 0
    %897 = vmatpush.bf16.msra.mxu0 0
    %898 = vmatpush.bf16.msra.mxu0 0
    %899 = vmatpush.bf16.msra.mxu0 %v887
    %900 = vmatpush.bf16.msra.mxu0 %v886
    %901 = vmatmul.bf16.gmra.mxu0 %v891
    %v902 = vpop.f32.mrf.mxu0
    %v903 = vadd.f32 %v876, %v902
    %v904 = vpop.f32.mrf.mxu0
    %v905 = vadd.f32 %v876, %v904
    %906 = vdwg.mxu0
    %v907 = vmul.f32 %v903, 0.5
    %v908 = vmul.f32 %v905, 0.5
    %v909 = vmul.f32 %v903, 0.044715
    %v910 = vmul.f32 %v905, 0.044715
    %v911 = vmul.f32 %v909, %v903
    %v912 = vmul.f32 %v910, %v905
    %v913 = vmul.f32 %v911, %v903
    %v914 = vmul.f32 %v912, %v905
    %v915 = vadd.f32 %v903, %v913
    %v916 = vadd.f32 %v905, %v914
    %v917 = vmul.f32 %v915, 0.7978846
    %v918 = vmul.f32 %v916, 0.7978846
    %v919 = vtanh.pop %v917
    %v920 = vtanh.pop %v918
    %v921 = vadd.f32 %v919, 1.0
    %v922 = vadd.f32 %v920, 1.0
    %v923 = vmul.f32 %v907, %v921
    %v924 = vmul.f32 %v908, %v922
    %s925 = scalar_lea.vmem %s10, 32
    %v926 = vld [vmem:[%s925] sm:$0xf]
    %v927 = vld [vmem:[%s925 + $0x4] sm:$0xf]
    %v928 = vld [vmem:[%s925 + $0x8] sm:$0xf]
    %v929 = vld [vmem:[%s925 + $0xc] sm:$0xf]
    %v930 = vld [vmem:[%s925 + $0x10] sm:$0xf]
    %v931 = vld [vmem:[%s925 + $0x14] sm:$0xf]
    %v932 = vld [vmem:[%s925 + $0x18] sm:$0xf]
    %v933 = vld [vmem:[%s925 + $0x1c] sm:$0xf]
    %v934 = vpack.c.bf16 %v924, %v923
    %s935 = scalar_lea.vmem %s11, 1
    %v936 = vld [vmem:[%s935] sm:$0x1]
    %v938 = vperm.slane %v936, 0
    %v948 = vunpack.c.l.b16 %v926
    %v949 = vunpack.c.l.b16 %v927
    %v950 = vunpack.c.l.b16 %v928
    %v951 = vunpack.c.l.b16 %v929
    %v952 = vunpack.c.l.b16 %v930
    %v953 = vunpack.c.l.b16 %v931
    %v954 = vunpack.c.l.b16 %v932
    %v955 = vunpack.c.l.b16 %v933
    %v956 = vpack.c.b16 %v949, %v948
    %v957 = vpack.c.b16 %v951, %v950
    %v958 = vpack.c.b16 %v953, %v952
    %v959 = vpack.c.b16 %v955, %v954
    %v965 = vsel %vm507, %v934, 0
    %967 = vmatpush.bf16.msra.mxu0 0
    %968 = vmatpush.bf16.msra.mxu0 0
    %969 = vmatpush.bf16.msra.mxu0 0
    %970 = vmatpush.bf16.msra.mxu0 0
    %971 = vmatpush.bf16.msra.mxu0 %v959
    %972 = vmatpush.bf16.msra.mxu0 %v958
    %973 = vmatpush.bf16.msra.mxu0 %v957
    %974 = vmatpush.bf16.msra.mxu0 %v956
    %975 = vmatmul.bf16.gmra.mxu0 %v965
    %v976 = vpop.f32.mrf.mxu0
    %v977 = vadd.f32 %v938, %v976
    %v978 = vpop.f32.mrf.mxu0
    %v979 = vadd.f32 %v938, %v978
    %980 = vdwg.mxu0
    %v981 = vadd.f32 %v977, %v865
    %v982 = vadd.f32 %v979, %v866
    %s983 = scalar_lea.vmem %s14, 1
    %v984 = vld [vmem:[%s983] sm:$0x1]
    %s985 = scalar_lea.vmem %s15, 1
    %v986 = vld [vmem:[%s985] sm:$0x1]
    %v987 = vsel %vm71, %v981, 0.0
    %988 = vadd.xlane.f32.xlu0 %v987
    %v989 = vpop.xlane.xlu0 %988
    %v990 = vsel %vm71, %v982, 0.0
    %991 = vadd.xlane.f32.xlu0 %v990
    %v992 = vpop.xlane.xlu0 %991
    %v993 = vmul.f32 %v989, %v84
    %v994 = vmul.f32 %v992, %v84
    %v995 = vsub.f32 %v981, %v993
    %v996 = vsub.f32 %v982, %v994
    %v997 = vmul.f32 %v995, %v995
    %v998 = vmul.f32 %v996, %v996
    %v999 = vsel %vm71, %v997, 0.0
    %1000 = vadd.xlane.f32.xlu0 %v999
    %v1001 = vpop.xlane.xlu0 %1000
    %v1002 = vsel %vm71, %v998, 0.0
    %1003 = vadd.xlane.f32.xlu0 %v1002
    %v1004 = vpop.xlane.xlu0 %1003
    %v1005 = vmul.f32 %v1001, %v84
    %v1006 = vmul.f32 %v1004, %v84
    %v1007 = vadd.f32 %v1005, 1e-12
    %v1008 = vadd.f32 %v1006, 1e-12
    %v1009 = vrsqrt.pop %v1007
    %v1010 = vmul.f32 %v1009, %v1007
    %v1011 = vmul.f32 %v1010, %v1009
    %v1012 = vmul.f32 0.5, %v1011
    %v1013 = vsub.f32 1.5, %v1012
    %v1014 = vmul.f32 %v1009, %v1013
    %vm1015 = vweird.f32 %v1007
    %vm1016 = vweird.f32 %v1009
    %vm1017 = vmor %vm1015, %vm1016
    %v1018 = vsel %vm1017, %v1009, %v1014
    %v1019 = vrsqrt.pop %v1008
    %v1020 = vmul.f32 %v1019, %v1008
    %v1021 = vmul.f32 %v1020, %v1019
    %v1022 = vmul.f32 0.5, %v1021
    %v1023 = vsub.f32 1.5, %v1022
    %v1024 = vmul.f32 %v1019, %v1023
    %vm1025 = vweird.f32 %v1008
    %vm1026 = vweird.f32 %v1019
    %vm1027 = vmor %vm1025, %vm1026
    %v1028 = vsel %vm1027, %v1019, %v1024
    %v1029 = vmul.f32 %v995, %v1018
    %v1030 = vmul.f32 %v996, %v1028
    %v1032 = vperm.slane %v984, 0
    %v1034 = vmul.f32 %v1029, %v1032
    %v1035 = vmul.f32 %v1030, %v1032
    %v1037 = vperm.slane %v986, 0
    %v1039 = vadd.f32 %v1034, %v1037
    %v1040 = vadd.f32 %v1035, %v1037
    %v1042 = vrot.slane %v1040, 7
    %vm1044 = vcmask 1040384
    %v1045 = vsel %vm1044, %v1039, %v1042
    %v1046 = vld [vmem:[%s16] sm:$0xf]
    %v1047 = vld [vmem:[%s16 + $0x4] sm:$0xf]
    %v1048 = vld [vmem:[%s16 + $0x8] sm:$0xf]
    %v1049 = vld [vmem:[%s16 + $0xc] sm:$0xf]
    %v1050 = vpack.c.bf16 %v1045, %v1045
    %v1051 = vld [vmem:[%s17] sm:$0x1]
    %v1053 = vperm.slane %v1051, 0
    %v1059 = vunpack.c.l.b16 %v1046
    %v1060 = vunpack.c.l.b16 %v1047
    %v1061 = vunpack.c.l.b16 %v1048
    %v1062 = vunpack.c.l.b16 %v1049
    %v1063 = vpack.c.b16 %v1060, %v1059
    %v1064 = vpack.c.b16 %v1062, %v1061
    %v1068 = vsel %vm71, %v1050, 0
    %1070 = vmatpush.bf16.msra.mxu0 0
    %1071 = vmatpush.bf16.msra.mxu0 0
    %1072 = vmatpush.bf16.msra.mxu0 0
    %1073 = vmatpush.bf16.msra.mxu0 0
    %1074 = vmatpush.bf16.msra.mxu0 0
    %1075 = vmatpush.bf16.msra.mxu0 0
    %1076 = vmatpush.bf16.msra.mxu0 %v1064
    %1077 = vmatpush.bf16.msra.mxu0 %v1063
    %1078 = vmatmul.bf16.gmra.mxu0 %v1068
    %v1079 = vpop.f32.mrf.mxu0
    %v1080 = vadd.f32 %v1053, %v1079
    %v1081 = vpop.f32.mrf.mxu0
    %1082 = vdwg.mxu0
    %v1083 = vtanh.pop %v1080
    %v1084 = vld [vmem:[%s18] sm:$0xf]
    %v1085 = vld [vmem:[%s18 + $0x4] sm:$0xf]
    %v1086 = vld [vmem:[%s18 + $0x8] sm:$0xf]
    %v1087 = vld [vmem:[%s18 + $0xc] sm:$0xf]
    %v1088 = vpack.c.bf16 %v1083, %v1083
    %v1089 = vld [vmem:[%s19] sm:$0x1]
    %v1091 = vperm.slane %v1089, 0
    %v1097 = vunpack.c.l.b16 %v1084
    %v1098 = vunpack.c.l.b16 %v1085
    %v1099 = vunpack.c.l.b16 %v1086
    %v1100 = vunpack.c.l.b16 %v1087
    %v1101 = vpack.c.b16 %v1098, %v1097
    %v1102 = vpack.c.b16 %v1100, %v1099
    %v1106 = vsel %vm71, %v1088, 0
    %1108 = vmatpush.bf16.msra.mxu0 0
    %1109 = vmatpush.bf16.msra.mxu0 0
    %1110 = vmatpush.bf16.msra.mxu0 0
    %1111 = vmatpush.bf16.msra.mxu0 0
    %1112 = vmatpush.bf16.msra.mxu0 0
    %1113 = vmatpush.bf16.msra.mxu0 0
    %1114 = vmatpush.bf16.msra.mxu0 %v1102
    %1115 = vmatpush.bf16.msra.mxu0 %v1101
    %1116 = vmatmul.bf16.gmra.mxu0 %v1106
    %v1117 = vpop.f32.mrf.mxu0
    %v1118 = vadd.f32 %v1091, %v1117
    %v1119 = vpop.f32.mrf.mxu0
    %1120 = vdwg.mxu0
    %vm1121 = vcmask 1041408
    %v1122 = vsel %vm1121, %v1118, -inf
    %1123 = vmax.xlane.f32.xlu0 %v1122
    %v1124 = vpop.xlane.xlu0 %1123
    %v1125 = vsub.f32 %v1118, %v1124
    %v1126 = vmul.f32 %v1125, 1.442695
    %v1127 = vpow.pop %v1126
    %v1128 = vsel %vm1121, %v1127, 0.0
    %1129 = vadd.xlane.f32.xlu0 %v1128
    %v1130 = vpop.xlane.xlu0 %1129
    %v1131 = vrcp.pop %v1130
    %v1132 = vmul.f32 %v1130, %v1131
    %v1133 = vsub.f32 1.0, %v1132
    %v1134 = vmul.f32 %v1131, %v1133
    %v1135 = vadd.f32 %v1131, %v1134
    %vm1136 = vweird.f32 %v1130
    %vm1137 = vweird.f32 %v1131
    %vm1138 = vmor %vm1136, %vm1137
    %v1139 = vsel %vm1138, %v1131, %v1135
    %v1140 = vand.u32 2147483647, %v1130
    %vm1141 = vcmp.eq.f32.partialorder %v1140, 8.507059e+37
    %v1142 = vand.u32 %v1130, 2147483648
    %v1143 = vor.u32 1.1754944e-38, %v1142
    %v1144 = vsel %vm1141, %v1143, %v1139
    %v1145 = vmul.f32 %v1127, %v1144
    %1146 = vst [vmem:[#allocation2] sm:$0x3] %v1145
    // Predicated region
    $region82: #{senti_reader_forward.1} parent=1 // pred_check
      _
    $region83: #{senti_reader_forward.1} parent=1 // pred_check_branch
      %1148 = sbr.rel (0) target = $region85
    $region84: #{senti_reader_forward.1} parent=1 // pred_region
      %1150 = vsyncadd [#allocation3], 0
      %s1152 = sshll.u32 [#allocation2], 4
      %s1153 = int_to_ptr.vmem [resolvable:$true] %s1152
      %s1154 = sshll.u32 %s20, 4
      %s1155 = int_to_ptr.hbm [resolvable:$true] %s1154
      %1157 = dma.vmem_to_hbm [thread:$0]  %s1153, 32, %s1155, [#allocation3]
    $region85: #{senti_reader_forward.1} parent=1 // pred_fallthru
      _
    // Predicated region
    $region86: #{senti_reader_forward.1} parent=1 // pred_check
      _
    $region87: #{senti_reader_forward.1} parent=1 // pred_check_branch
      %1159 = sbr.rel (0) target = $region89
    $region88: #{senti_reader_forward.1} parent=1 // pred_region
      %1161 = dma.done [#allocation3], 32
    $region89: #{senti_reader_forward.1} parent=1 // pred_fallthru
      _
    %1162 = vsyncpa [#allocation3], 1

</llo_original>
